<compile_context>
chip_gen: v6e
topology: v6e:2x2x1
jax: 0.10.0
libtpu: 0.0.40
codegen_flags: <defaults>
</compile_context>

<pallas_src>
import functools
import math

import jax
import jax.numpy as jnp
from jax.experimental import pallas as pl
from jax.experimental.pallas import tpu as pltpu

_LN_EPS = 1e-5
_INV_SQRT2 = 1.0 / math.sqrt(2.0)


def _gelu_exact(h):
    # exact (erf) GELU, matches nn.GELU() default
    return 0.5 * h * (1.0 + jax.lax.erf(h * _INV_SQRT2))


def _layer_norm_f32(x, gamma, beta):
    mu = jnp.mean(x, axis=-1, keepdims=True)
    var = jnp.mean(jnp.square(x - mu), axis=-1, keepdims=True)
    return (x - mu) * jax.lax.rsqrt(var + _LN_EPS) * gamma + beta


def _pick_sublane_tile(n, target):
    """Largest multiple-of-8 divisor of n that is <= target; else n (full)."""
    if n <= target:
        return n
    t = (target // 8) * 8
    while t >= 8:
        if n % t == 0:
            return t
        t -= 8
    return n


def _pick_lane_tile(n, target):
    """Largest multiple-of-128 divisor of n that is <= target; else n (full)."""
    if n <= target:
        return n
    t = (target // 128) * 128
    while t >= 128:
        if n % t == 0:
            return t
        t -= 128
    return n


# ---------------------------------------------------------------------------
# Kernel 1: LayerNorm1 + multi-head self-attention + output projection + residual
# ---------------------------------------------------------------------------
def _attn_kernel(x_ref, g1_ref, be1_ref,
                 wq_ref, bq_ref, wk_ref, bk_ref, wv_ref, bv_ref,
                 wo_ref, bo_ref, o_ref, *, num_heads, head_dim):
    x_f32 = x_ref[0].astype(jnp.float32)                          # (S, H)
    hn = _layer_norm_f32(x_f32,
                         g1_ref[...].astype(jnp.float32),
                         be1_ref[...].astype(jnp.float32))
    hn = hn.astype(x_ref.dtype)                                   # native dtype into the MXU

    q = jnp.dot(hn, wq_ref[...], preferred_element_type=jnp.float32) + bq_ref[...].astype(jnp.float32)
    k = jnp.dot(hn, wk_ref[...], preferred_element_type=jnp.float32) + bk_ref[...].astype(jnp.float32)
    v = jnp.dot(hn, wv_ref[...], preferred_element_type=jnp.float32) + bv_ref[...].astype(jnp.float32)

    scale = 1.0 / math.sqrt(head_dim)
    head_outs = []
    for h in range(num_heads):                                    # static loop over heads
        sl = slice(h * head_dim, (h + 1) * head_dim)
        qh, kh, vh = q[:, sl], k[:, sl], v[:, sl]
        s = jnp.dot(qh, kh.T, preferred_element_type=jnp.float32) * scale
        s = s - jnp.max(s, axis=-1, keepdims=True)                # numerically stable softmax
        p = jnp.exp(s)
        p = p / jnp.sum(p, axis=-1, keepdims=True)
        head_outs.append(jnp.dot(p, vh, preferred_element_type=jnp.float32))
    attn = jnp.concatenate(head_outs, axis=-1)                    # (S, H)

    proj = jnp.dot(attn.astype(wo_ref.dtype), wo_ref[...],
                   preferred_element_type=jnp.float32) + bo_ref[...].astype(jnp.float32)
    o_ref[0] = (x_f32 + proj).astype(o_ref.dtype)                 # residual: x + attention(LN1(x))


def _attention_block(x, g1, be1, wq, bq, wk, bk, wv, bv, wo, bo, *, num_heads):
    B, S, H = x.shape
    head_dim = H // num_heads
    dt = x.dtype.itemsize
    flops = int(B * (8 * S * H * H + 4 * S * S * H))
    trans = int(B * num_heads * S * S)                            # exp in softmax
    bytes_acc = int(dt * (2 * B * S * H + 4 * H * H + 5 * H))

    kernel = functools.partial(_attn_kernel, num_heads=num_heads, head_dim=head_dim)
    full = lambda b: (0, 0)                                       # weights resident across the grid

    return pl.pallas_call(
        kernel,
        out_shape=jax.ShapeDtypeStruct((B, S, H), x.dtype),
        grid_spec=pltpu.PrefetchScalarGridSpec(
            num_scalar_prefetch=0,
            grid=(B,),
            in_specs=[
                pl.BlockSpec((1, S, H), lambda b: (b, 0, 0)),     # x
                pl.BlockSpec((1, H), full), pl.BlockSpec((1, H), full),   # ln1 gamma/beta
                pl.BlockSpec((H, H), full), pl.BlockSpec((1, H), full),   # wq, bq
                pl.BlockSpec((H, H), full), pl.BlockSpec((1, H), full),   # wk, bk
                pl.BlockSpec((H, H), full), pl.BlockSpec((1, H), full),   # wv, bv
                pl.BlockSpec((H, H), full), pl.BlockSpec((1, H), full),   # wo, bo
            ],
            out_specs=pl.BlockSpec((1, S, H), lambda b: (b, 0, 0)),
        ),
        compiler_params=pltpu.CompilerParams(
            dimension_semantics=("parallel",),
            vmem_limit_bytes=48 << 20),
        cost_estimate=pl.CostEstimate(
            flops=flops, transcendentals=trans, bytes_accessed=bytes_acc),
    )(x,
      g1.reshape(1, H), be1.reshape(1, H),
      wq, bq.reshape(1, H), wk, bk.reshape(1, H),
      wv, bv.reshape(1, H), wo, bo.reshape(1, H))


# ---------------------------------------------------------------------------
# Kernel 2: LayerNorm2 + FeedForward (Linear -> GELU -> Linear -> Dropout(eval)) + residual
# Grid: (token tiles, intermediate tiles).  Accumulator pattern on the I axis.
# ---------------------------------------------------------------------------
def _ln_ffn_kernel(x_ref, g2_ref, be2_ref, w1_ref, b1_ref, w2_ref, b2_ref,
                   o_ref, xn_ref, acc_ref):
    i = pl.program_id(1)

    @pl.when(i == 0)
    def _():
        x = x_ref[...].astype(jnp.float32)
        xn_f32 = _layer_norm_f32(x,
                                 g2_ref[...].astype(jnp.float32),
                                 be2_ref[...].astype(jnp.float32))
        xn_ref[...] = xn_f32.astype(xn_ref.dtype)   # cached normalized tile (native dtype)
        acc_ref[...] = xn_f32                       # accumulator initialized with the residual

    xn = xn_ref[...]
    h = jnp.dot(xn, w1_ref[...], preferred_element_type=jnp.float32)
    h = h + b1_ref[...].astype(jnp.float32)
    h = _gelu_exact(h)
    acc_ref[...] += jnp.dot(h.astype(w2_ref.dtype), w2_ref[...],
                            preferred_element_type=jnp.float32)

    @pl.when(i == pl.num_programs(1) - 1)
    def _():
        # b2 added once at finalize (hoisted out of the I loop); Dropout(0.5) eval == identity
        o_ref[...] = (acc_ref[...] + b2_ref[...].astype(jnp.float32)).astype(o_ref.dtype)


def _ln_ffn_block(x, g2, be2, w1, b1, w2, b2, *, tile_t_target=256, tile_i_target=512):
    orig_shape = x.shape
    H = orig_shape[-1]
    I = w1.shape[1]
    x2d = x.reshape(-1, H)
    T = x2d.shape[0]

    tile_t = _pick_sublane_tile(T, tile_t_target)
    tile_i = _pick_lane_tile(I, tile_i_target)
    grid = (T // tile_t, I // tile_i)

    dt = x.dtype.itemsize
    flops = int(4 * T * H * I)
    trans = int(T * I)                                            # erf in GELU
    bytes_acc = int(dt * (2 * T * H + 2 * H * I + I + 2 * H))

    out = pl.pallas_call(
        _ln_ffn_kernel,
        out_shape=jax.ShapeDtypeStruct((T, H), x.dtype),
        grid_spec=pltpu.PrefetchScalarGridSpec(
            num_scalar_prefetch=0,
            grid=grid,
            in_specs=[
                pl.BlockSpec((tile_t, H), lambda t, i: (t, 0)),   # x token tile
                pl.BlockSpec((1, H), lambda t, i: (0, 0)),        # ln2 gamma
                pl.BlockSpec((1, H), lambda t, i: (0, 0)),        # ln2 beta
                pl.BlockSpec((H, tile_i), lambda t, i: (0, i)),   # w1 column block
                pl.BlockSpec((1, tile_i), lambda t, i: (0, i)),   # b1 block
                pl.BlockSpec((tile_i, H), lambda t, i: (i, 0)),   # w2 row block
                pl.BlockSpec((1, H), lambda t, i: (0, 0)),        # b2
            ],
            out_specs=pl.BlockSpec((tile_t, H), lambda t, i: (t, 0)),
            scratch_shapes=[
                pltpu.VMEM((tile_t, H), x.dtype),                 # cached LN2(x) tile
                pltpu.VMEM((tile_t, H), jnp.float32),             # f32 accumulator
            ]),
        compiler_params=pltpu.CompilerParams(
            dimension_semantics=("parallel", "arbitrary"),
            vmem_limit_bytes=48 << 20),
        cost_estimate=pl.CostEstimate(
            flops=flops, transcendentals=trans, bytes_accessed=bytes_acc),
    )(x2d, g2.reshape(1, H), be2.reshape(1, H),
      w1, b1.reshape(1, I), w2, b2.reshape(1, H))

    return out.reshape(orig_shape)


def transformer_encoder_layer(x, params, *, num_heads):
    x_mid = _attention_block(
        x, params["ln1_g"], params["ln1_b"],
        params["wq"], params["bq"], params["wk"], params["bk"],
        params["wv"], params["bv"], params["wo"], params["bo"],
        num_heads=num_heads)
    return _ln_ffn_block(
        x_mid, params["ln2_g"], params["ln2_b"],
        params["w1"], params["b1"], params["w2"], params["b2"])


if __name__ == "__main__":
    # Small config: batch=2, seq=8, hidden=32, heads=4 (head_dim=8), intermediate=128
    B, S, H, NH, I = 2, 8, 32, 4, 128
    hd = H // NH

    key = jax.random.PRNGKey(0)
    keys = jax.random.split(key, 17)

    def lin_init(kw, kb, fan_in, fan_out):
        lim = 1.0 / math.sqrt(fan_in)
        w = jax.random.uniform(kw, (fan_in, fan_out), minval=-lim, maxval=lim, dtype=jnp.float32)
        b = jax.random.uniform(kb, (fan_out,), minval=-lim, maxval=lim, dtype=jnp.float32)
        return w, b

    x = jax.random.normal(keys[0], (B, S, H), dtype=jnp.float32)
    wq, bq = lin_init(keys[1], keys[2], H, H)     # per-head q Linears stacked column-wise
    wk, bk = lin_init(keys[3], keys[4], H, H)
    wv, bv = lin_init(keys[5], keys[6], H, H)
    wo, bo = lin_init(keys[7], keys[8], H, H)
    w1, b1 = lin_init(keys[9], keys[10], H, I)
    w2, b2 = lin_init(keys[11], keys[12], I, H)

    params = dict(
        ln1_g=1.0 + 0.1 * jax.random.normal(keys[13], (H,), dtype=jnp.float32),
        ln1_b=0.1 * jax.random.normal(keys[14], (H,), dtype=jnp.float32),
        ln2_g=1.0 + 0.1 * jax.random.normal(keys[15], (H,), dtype=jnp.float32),
        ln2_b=0.1 * jax.random.normal(keys[16], (H,), dtype=jnp.float32),
        wq=wq, bq=bq, wk=wk, bk=bk, wv=wv, bv=bv, wo=wo, bo=bo,
        w1=w1, b1=b1, w2=w2, b2=b2)

    y = transformer_encoder_layer(x, params, num_heads=NH)
    jax.block_until_ready(y)

    # Pure-JAX reference (same math as the PyTorch module in eval mode, mask=None)
    def ref_forward(xr):
        def ln(v, g, b):
            mu = v.mean(-1, keepdims=True)
            var = ((v - mu) ** 2).mean(-1, keepdims=True)
            return (v - mu) / jnp.sqrt(var + _LN_EPS) * g + b

        hr = ln(xr, params["ln1_g"], params["ln1_b"])
        q = hr @ wq + bq
        k = hr @ wk + bk
        v = hr @ wv + bv
        outs = []
        for i in range(NH):
            sl = slice(i * hd, (i + 1) * hd)
            s = (q[..., sl] @ jnp.swapaxes(k[..., sl], -1, -2)) / math.sqrt(hd)
            p = jax.nn.softmax(s, axis=-1)
            outs.append(p @ v[..., sl])
        attn = jnp.concatenate(outs, axis=-1) @ wo + bo
        xm = xr + attn
        xn = ln(xm, params["ln2_g"], params["ln2_b"])
        ff = xn @ w1 + b1
        ff = 0.5 * ff * (1.0 + jax.lax.erf(ff * _INV_SQRT2))
        ff = ff @ w2 + b2
        return xn + ff

    y_ref = ref_forward(x)
    assert y.shape == (B, S, H)
    err = float(jnp.max(jnp.abs(y - y_ref)))
    assert jnp.allclose(y, y_ref, atol=1e-4, rtol=1e-4), f"max abs err {err}"

    print("KERNEL_OK")
</pallas_src>

<mosaic_0001>
module attributes {stable_mosaic.version = 11 : i64} {
  func.func @_attn_kernel(%arg0: i32, %arg1: memref<1x8x32xf32, #tpu.memory_space<vmem>>, %arg2: memref<1x32xf32, #tpu.memory_space<vmem>>, %arg3: memref<1x32xf32, #tpu.memory_space<vmem>>, %arg4: memref<32x32xf32, #tpu.memory_space<vmem>>, %arg5: memref<1x32xf32, #tpu.memory_space<vmem>>, %arg6: memref<32x32xf32, #tpu.memory_space<vmem>>, %arg7: memref<1x32xf32, #tpu.memory_space<vmem>>, %arg8: memref<32x32xf32, #tpu.memory_space<vmem>>, %arg9: memref<1x32xf32, #tpu.memory_space<vmem>>, %arg10: memref<32x32xf32, #tpu.memory_space<vmem>>, %arg11: memref<1x32xf32, #tpu.memory_space<vmem>>, %arg12: memref<1x8x32xf32, #tpu.memory_space<vmem>>) attributes {dimension_semantics = [#tpu.dimension_semantics<parallel>], iteration_bounds = array<i64: 2>, scalar_prefetch = 0 : i64, scratch_operands = 0 : i64, tpu.core_type = #tpu.core_type<tc>, window_params = [{transform_indices = @transform_0, window_bounds = array<i64: 1, 8, 32>}, {pipeline_mode = #tpu.pipeline_mode<synchronous>, transform_indices = @transform_1, window_bounds = array<i64: 1, 32>}, {pipeline_mode = #tpu.pipeline_mode<synchronous>, transform_indices = @transform_2, window_bounds = array<i64: 1, 32>}, {pipeline_mode = #tpu.pipeline_mode<synchronous>, transform_indices = @transform_3, window_bounds = array<i64: 32, 32>}, {pipeline_mode = #tpu.pipeline_mode<synchronous>, transform_indices = @transform_4, window_bounds = array<i64: 1, 32>}, {pipeline_mode = #tpu.pipeline_mode<synchronous>, transform_indices = @transform_5, window_bounds = array<i64: 32, 32>}, {pipeline_mode = #tpu.pipeline_mode<synchronous>, transform_indices = @transform_6, window_bounds = array<i64: 1, 32>}, {pipeline_mode = #tpu.pipeline_mode<synchronous>, transform_indices = @transform_7, window_bounds = array<i64: 32, 32>}, {pipeline_mode = #tpu.pipeline_mode<synchronous>, transform_indices = @transform_8, window_bounds = array<i64: 1, 32>}, {pipeline_mode = #tpu.pipeline_mode<synchronous>, transform_indices = @transform_9, window_bounds = array<i64: 32, 32>}, {pipeline_mode = #tpu.pipeline_mode<synchronous>, transform_indices = @transform_10, window_bounds = array<i64: 1, 32>}, {transform_indices = @transform_11, window_bounds = array<i64: 1, 8, 32>}]} {
    %c0 = arith.constant 0 : index
    %c0_0 = arith.constant 0 : index
    %c0_1 = arith.constant 0 : index
    %0 = vector.load %arg1[%c0, %c0_0, %c0_1] : memref<1x8x32xf32, #tpu.memory_space<vmem>>, vector<1x8x32xf32>
    %1 = vector.shape_cast %0 : vector<1x8x32xf32> to vector<8x32xf32>
    %c0_2 = arith.constant 0 : index
    %c0_3 = arith.constant 0 : index
    %2 = vector.load %arg2[%c0_2, %c0_3] : memref<1x32xf32, #tpu.memory_space<vmem>>, vector<1x32xf32>
    %c0_4 = arith.constant 0 : index
    %c0_5 = arith.constant 0 : index
    %3 = vector.load %arg3[%c0_4, %c0_5] : memref<1x32xf32, #tpu.memory_space<vmem>>, vector<1x32xf32>
    %cst = arith.constant dense<0.000000e+00> : vector<8xf32>
    %4 = vector.multi_reduction <add>, %1, %cst [1] : vector<8x32xf32> to vector<8xf32>
    %5 = vector.shape_cast %4 : vector<8xf32> to vector<8x1xf32>
    %cst_6 = arith.constant 3.200000e+01 : f32
    %6 = vector.broadcast %cst_6 : f32 to vector<8x1xf32>
    %7 = arith.divf %5, %6 : vector<8x1xf32>
    %8 = vector.broadcast %7 : vector<8x1xf32> to vector<8x32xf32>
    %9 = arith.subf %1, %8 : vector<8x32xf32>
    %10 = arith.mulf %9, %9 : vector<8x32xf32>
    %cst_7 = arith.constant dense<0.000000e+00> : vector<8xf32>
    %11 = vector.multi_reduction <add>, %10, %cst_7 [1] : vector<8x32xf32> to vector<8xf32>
    %12 = vector.shape_cast %11 : vector<8xf32> to vector<8x1xf32>
    %cst_8 = arith.constant 3.200000e+01 : f32
    %13 = vector.broadcast %cst_8 : f32 to vector<8x1xf32>
    %14 = arith.divf %12, %13 : vector<8x1xf32>
    %15 = vector.broadcast %7 : vector<8x1xf32> to vector<8x32xf32>
    %16 = arith.subf %1, %15 : vector<8x32xf32>
    %cst_9 = arith.constant 9.99999974E-6 : f32
    %17 = vector.broadcast %cst_9 : f32 to vector<8x1xf32>
    %18 = arith.addf %14, %17 : vector<8x1xf32>
    %19 = math.rsqrt %18 : vector<8x1xf32>
    %20 = vector.broadcast %19 : vector<8x1xf32> to vector<8x32xf32>
    %21 = arith.mulf %16, %20 : vector<8x32xf32>
    %22 = vector.broadcast %2 : vector<1x32xf32> to vector<8x32xf32>
    %23 = arith.mulf %21, %22 : vector<8x32xf32>
    %24 = vector.broadcast %3 : vector<1x32xf32> to vector<8x32xf32>
    %25 = arith.addf %23, %24 : vector<8x32xf32>
    %c0_10 = arith.constant 0 : index
    %c0_11 = arith.constant 0 : index
    %26 = vector.load %arg4[%c0_10, %c0_11] : memref<32x32xf32, #tpu.memory_space<vmem>>, vector<32x32xf32>
    %cst_12 = arith.constant dense<0.000000e+00> : vector<8x32xf32>
    %27 = tpu.matmul %25, %26, %cst_12 {dimension_numbers = #tpu.dot_dimension_numbers<[1], [0], [0], [1], [0, 0, 1, 1], [], []>} : vector<8x32xf32>, vector<32x32xf32>, vector<8x32xf32> -> vector<8x32xf32>
    %c0_13 = arith.constant 0 : index
    %c0_14 = arith.constant 0 : index
    %28 = vector.load %arg5[%c0_13, %c0_14] : memref<1x32xf32, #tpu.memory_space<vmem>>, vector<1x32xf32>
    %29 = vector.broadcast %28 : vector<1x32xf32> to vector<8x32xf32>
    %30 = arith.addf %27, %29 : vector<8x32xf32>
    %c0_15 = arith.constant 0 : index
    %c0_16 = arith.constant 0 : index
    %31 = vector.load %arg6[%c0_15, %c0_16] : memref<32x32xf32, #tpu.memory_space<vmem>>, vector<32x32xf32>
    %cst_17 = arith.constant dense<0.000000e+00> : vector<8x32xf32>
    %32 = tpu.matmul %25, %31, %cst_17 {dimension_numbers = #tpu.dot_dimension_numbers<[1], [0], [0], [1], [0, 0, 1, 1], [], []>} : vector<8x32xf32>, vector<32x32xf32>, vector<8x32xf32> -> vector<8x32xf32>
    %c0_18 = arith.constant 0 : index
    %c0_19 = arith.constant 0 : index
    %33 = vector.load %arg7[%c0_18, %c0_19] : memref<1x32xf32, #tpu.memory_space<vmem>>, vector<1x32xf32>
    %34 = vector.broadcast %33 : vector<1x32xf32> to vector<8x32xf32>
    %35 = arith.addf %32, %34 : vector<8x32xf32>
    %c0_20 = arith.constant 0 : index
    %c0_21 = arith.constant 0 : index
    %36 = vector.load %arg8[%c0_20, %c0_21] : memref<32x32xf32, #tpu.memory_space<vmem>>, vector<32x32xf32>
    %cst_22 = arith.constant dense<0.000000e+00> : vector<8x32xf32>
    %37 = tpu.matmul %25, %36, %cst_22 {dimension_numbers = #tpu.dot_dimension_numbers<[1], [0], [0], [1], [0, 0, 1, 1], [], []>} : vector<8x32xf32>, vector<32x32xf32>, vector<8x32xf32> -> vector<8x32xf32>
    %c0_23 = arith.constant 0 : index
    %c0_24 = arith.constant 0 : index
    %38 = vector.load %arg9[%c0_23, %c0_24] : memref<1x32xf32, #tpu.memory_space<vmem>>, vector<1x32xf32>
    %39 = vector.broadcast %38 : vector<1x32xf32> to vector<8x32xf32>
    %40 = arith.addf %37, %39 : vector<8x32xf32>
    %41 = vector.extract_strided_slice %30 {offsets = [0, 0], sizes = [8, 8], strides = [1, 1]} : vector<8x32xf32> to vector<8x8xf32>
    %42 = vector.extract_strided_slice %35 {offsets = [0, 0], sizes = [8, 8], strides = [1, 1]} : vector<8x32xf32> to vector<8x8xf32>
    %43 = vector.extract_strided_slice %40 {offsets = [0, 0], sizes = [8, 8], strides = [1, 1]} : vector<8x32xf32> to vector<8x8xf32>
    %44 = tpu.transpose %42, [1, 0] : vector<8x8xf32> -> vector<8x8xf32>
    %cst_25 = arith.constant dense<0.000000e+00> : vector<8x8xf32>
    %45 = tpu.matmul %41, %44, %cst_25 {dimension_numbers = #tpu.dot_dimension_numbers<[1], [0], [0], [1], [0, 0, 1, 1], [], []>} : vector<8x8xf32>, vector<8x8xf32>, vector<8x8xf32> -> vector<8x8xf32>
    %cst_26 = arith.constant 0.353553385 : f32
    %46 = vector.broadcast %cst_26 : f32 to vector<8x8xf32>
    %47 = arith.mulf %45, %46 : vector<8x8xf32>
    %cst_27 = arith.constant dense<0xFF800000> : vector<8xf32>
    %48 = vector.multi_reduction <maximumf>, %47, %cst_27 [1] : vector<8x8xf32> to vector<8xf32>
    %49 = vector.shape_cast %48 : vector<8xf32> to vector<8x1xf32>
    %50 = vector.broadcast %49 : vector<8x1xf32> to vector<8x8xf32>
    %51 = arith.subf %47, %50 : vector<8x8xf32>
    %52 = math.exp %51 : vector<8x8xf32>
    %cst_28 = arith.constant dense<0.000000e+00> : vector<8xf32>
    %53 = vector.multi_reduction <add>, %52, %cst_28 [1] : vector<8x8xf32> to vector<8xf32>
    %54 = vector.shape_cast %53 : vector<8xf32> to vector<8x1xf32>
    %55 = vector.broadcast %54 : vector<8x1xf32> to vector<8x8xf32>
    %56 = arith.divf %52, %55 : vector<8x8xf32>
    %cst_29 = arith.constant dense<0.000000e+00> : vector<8x8xf32>
    %57 = tpu.matmul %56, %43, %cst_29 {dimension_numbers = #tpu.dot_dimension_numbers<[1], [0], [0], [1], [0, 0, 1, 1], [], []>} : vector<8x8xf32>, vector<8x8xf32>, vector<8x8xf32> -> vector<8x8xf32>
    %58 = vector.extract_strided_slice %30 {offsets = [0, 8], sizes = [8, 8], strides = [1, 1]} : vector<8x32xf32> to vector<8x8xf32>
    %59 = vector.extract_strided_slice %35 {offsets = [0, 8], sizes = [8, 8], strides = [1, 1]} : vector<8x32xf32> to vector<8x8xf32>
    %60 = vector.extract_strided_slice %40 {offsets = [0, 8], sizes = [8, 8], strides = [1, 1]} : vector<8x32xf32> to vector<8x8xf32>
    %61 = tpu.transpose %59, [1, 0] : vector<8x8xf32> -> vector<8x8xf32>
    %cst_30 = arith.constant dense<0.000000e+00> : vector<8x8xf32>
    %62 = tpu.matmul %58, %61, %cst_30 {dimension_numbers = #tpu.dot_dimension_numbers<[1], [0], [0], [1], [0, 0, 1, 1], [], []>} : vector<8x8xf32>, vector<8x8xf32>, vector<8x8xf32> -> vector<8x8xf32>
    %cst_31 = arith.constant 0.353553385 : f32
    %63 = vector.broadcast %cst_31 : f32 to vector<8x8xf32>
    %64 = arith.mulf %62, %63 : vector<8x8xf32>
    %cst_32 = arith.constant dense<0xFF800000> : vector<8xf32>
    %65 = vector.multi_reduction <maximumf>, %64, %cst_32 [1] : vector<8x8xf32> to vector<8xf32>
    %66 = vector.shape_cast %65 : vector<8xf32> to vector<8x1xf32>
    %67 = vector.broadcast %66 : vector<8x1xf32> to vector<8x8xf32>
    %68 = arith.subf %64, %67 : vector<8x8xf32>
    %69 = math.exp %68 : vector<8x8xf32>
    %cst_33 = arith.constant dense<0.000000e+00> : vector<8xf32>
    %70 = vector.multi_reduction <add>, %69, %cst_33 [1] : vector<8x8xf32> to vector<8xf32>
    %71 = vector.shape_cast %70 : vector<8xf32> to vector<8x1xf32>
    %72 = vector.broadcast %71 : vector<8x1xf32> to vector<8x8xf32>
    %73 = arith.divf %69, %72 : vector<8x8xf32>
    %cst_34 = arith.constant dense<0.000000e+00> : vector<8x8xf32>
    %74 = tpu.matmul %73, %60, %cst_34 {dimension_numbers = #tpu.dot_dimension_numbers<[1], [0], [0], [1], [0, 0, 1, 1], [], []>} : vector<8x8xf32>, vector<8x8xf32>, vector<8x8xf32> -> vector<8x8xf32>
    %75 = vector.extract_strided_slice %30 {offsets = [0, 16], sizes = [8, 8], strides = [1, 1]} : vector<8x32xf32> to vector<8x8xf32>
    %76 = vector.extract_strided_slice %35 {offsets = [0, 16], sizes = [8, 8], strides = [1, 1]} : vector<8x32xf32> to vector<8x8xf32>
    %77 = vector.extract_strided_slice %40 {offsets = [0, 16], sizes = [8, 8], strides = [1, 1]} : vector<8x32xf32> to vector<8x8xf32>
    %78 = tpu.transpose %76, [1, 0] : vector<8x8xf32> -> vector<8x8xf32>
    %cst_35 = arith.constant dense<0.000000e+00> : vector<8x8xf32>
    %79 = tpu.matmul %75, %78, %cst_35 {dimension_numbers = #tpu.dot_dimension_numbers<[1], [0], [0], [1], [0, 0, 1, 1], [], []>} : vector<8x8xf32>, vector<8x8xf32>, vector<8x8xf32> -> vector<8x8xf32>
    %cst_36 = arith.constant 0.353553385 : f32
    %80 = vector.broadcast %cst_36 : f32 to vector<8x8xf32>
    %81 = arith.mulf %79, %80 : vector<8x8xf32>
    %cst_37 = arith.constant dense<0xFF800000> : vector<8xf32>
    %82 = vector.multi_reduction <maximumf>, %81, %cst_37 [1] : vector<8x8xf32> to vector<8xf32>
    %83 = vector.shape_cast %82 : vector<8xf32> to vector<8x1xf32>
    %84 = vector.broadcast %83 : vector<8x1xf32> to vector<8x8xf32>
    %85 = arith.subf %81, %84 : vector<8x8xf32>
    %86 = math.exp %85 : vector<8x8xf32>
    %cst_38 = arith.constant dense<0.000000e+00> : vector<8xf32>
    %87 = vector.multi_reduction <add>, %86, %cst_38 [1] : vector<8x8xf32> to vector<8xf32>
    %88 = vector.shape_cast %87 : vector<8xf32> to vector<8x1xf32>
    %89 = vector.broadcast %88 : vector<8x1xf32> to vector<8x8xf32>
    %90 = arith.divf %86, %89 : vector<8x8xf32>
    %cst_39 = arith.constant dense<0.000000e+00> : vector<8x8xf32>
    %91 = tpu.matmul %90, %77, %cst_39 {dimension_numbers = #tpu.dot_dimension_numbers<[1], [0], [0], [1], [0, 0, 1, 1], [], []>} : vector<8x8xf32>, vector<8x8xf32>, vector<8x8xf32> -> vector<8x8xf32>
    %92 = vector.extract_strided_slice %30 {offsets = [0, 24], sizes = [8, 8], strides = [1, 1]} : vector<8x32xf32> to vector<8x8xf32>
    %93 = vector.extract_strided_slice %35 {offsets = [0, 24], sizes = [8, 8], strides = [1, 1]} : vector<8x32xf32> to vector<8x8xf32>
    %94 = vector.extract_strided_slice %40 {offsets = [0, 24], sizes = [8, 8], strides = [1, 1]} : vector<8x32xf32> to vector<8x8xf32>
    %95 = tpu.transpose %93, [1, 0] : vector<8x8xf32> -> vector<8x8xf32>
    %cst_40 = arith.constant dense<0.000000e+00> : vector<8x8xf32>
    %96 = tpu.matmul %92, %95, %cst_40 {dimension_numbers = #tpu.dot_dimension_numbers<[1], [0], [0], [1], [0, 0, 1, 1], [], []>} : vector<8x8xf32>, vector<8x8xf32>, vector<8x8xf32> -> vector<8x8xf32>
    %cst_41 = arith.constant 0.353553385 : f32
    %97 = vector.broadcast %cst_41 : f32 to vector<8x8xf32>
    %98 = arith.mulf %96, %97 : vector<8x8xf32>
    %cst_42 = arith.constant dense<0xFF800000> : vector<8xf32>
    %99 = vector.multi_reduction <maximumf>, %98, %cst_42 [1] : vector<8x8xf32> to vector<8xf32>
    %100 = vector.shape_cast %99 : vector<8xf32> to vector<8x1xf32>
    %101 = vector.broadcast %100 : vector<8x1xf32> to vector<8x8xf32>
    %102 = arith.subf %98, %101 : vector<8x8xf32>
    %103 = math.exp %102 : vector<8x8xf32>
    %cst_43 = arith.constant dense<0.000000e+00> : vector<8xf32>
    %104 = vector.multi_reduction <add>, %103, %cst_43 [1] : vector<8x8xf32> to vector<8xf32>
    %105 = vector.shape_cast %104 : vector<8xf32> to vector<8x1xf32>
    %106 = vector.broadcast %105 : vector<8x1xf32> to vector<8x8xf32>
    %107 = arith.divf %103, %106 : vector<8x8xf32>
    %cst_44 = arith.constant dense<0.000000e+00> : vector<8x8xf32>
    %108 = tpu.matmul %107, %94, %cst_44 {dimension_numbers = #tpu.dot_dimension_numbers<[1], [0], [0], [1], [0, 0, 1, 1], [], []>} : vector<8x8xf32>, vector<8x8xf32>, vector<8x8xf32> -> vector<8x8xf32>
    %109 = tpu.concatenate %57, %74, %91, %108 in 1 : vector<8x8xf32>, vector<8x8xf32>, vector<8x8xf32>, vector<8x8xf32> -> vector<8x32xf32>
    %c0_45 = arith.constant 0 : index
    %c0_46 = arith.constant 0 : index
    %110 = vector.load %arg10[%c0_45, %c0_46] : memref<32x32xf32, #tpu.memory_space<vmem>>, vector<32x32xf32>
    %cst_47 = arith.constant dense<0.000000e+00> : vector<8x32xf32>
    %111 = tpu.matmul %109, %110, %cst_47 {dimension_numbers = #tpu.dot_dimension_numbers<[1], [0], [0], [1], [0, 0, 1, 1], [], []>} : vector<8x32xf32>, vector<32x32xf32>, vector<8x32xf32> -> vector<8x32xf32>
    %c0_48 = arith.constant 0 : index
    %c0_49 = arith.constant 0 : index
    %112 = vector.load %arg11[%c0_48, %c0_49] : memref<1x32xf32, #tpu.memory_space<vmem>>, vector<1x32xf32>
    %113 = vector.broadcast %112 : vector<1x32xf32> to vector<8x32xf32>
    %114 = arith.addf %111, %113 : vector<8x32xf32>
    %115 = arith.addf %1, %114 : vector<8x32xf32>
    %c0_50 = arith.constant 0 : index
    %c0_51 = arith.constant 0 : index
    %c0_52 = arith.constant 0 : index
    %116 = vector.load %arg12[%c0_50, %c0_51, %c0_52] : memref<1x8x32xf32, #tpu.memory_space<vmem>>, vector<1x8x32xf32>
    %117 = vector.shape_cast %116 : vector<1x8x32xf32> to vector<8x32xf32>
    %118 = vector.shape_cast %115 : vector<8x32xf32> to vector<1x8x32xf32>
    tpu.vector_store %arg12[%c0_50, %c0_51, %c0_52], %118 {strides = array<i32>} : memref<1x8x32xf32, #tpu.memory_space<vmem>>, vector<1x8x32xf32>,
    return
  }
  func.func @transform_0(%arg0: i32) -> (i32, i32, i32) {
    %c0_i32 = arith.constant 0 : i32
    %c0_i32_0 = arith.constant 0 : i32
    %c0_i32_1 = arith.constant 0 : i32
    return %arg0, %c0_i32, %c0_i32_0 : i32, i32, i32
  }
  func.func @transform_1(%arg0: i32) -> (i32, i32) {
    %c0_i32 = arith.constant 0 : i32
    %c0_i32_0 = arith.constant 0 : i32
    %c0_i32_1 = arith.constant 0 : i32
    return %c0_i32, %c0_i32_0 : i32, i32
  }
  func.func @transform_2(%arg0: i32) -> (i32, i32) {
    %c0_i32 = arith.constant 0 : i32
    %c0_i32_0 = arith.constant 0 : i32
    %c0_i32_1 = arith.constant 0 : i32
    return %c0_i32, %c0_i32_0 : i32, i32
  }
  func.func @transform_3(%arg0: i32) -> (i32, i32) {
    %c0_i32 = arith.constant 0 : i32
    %c0_i32_0 = arith.constant 0 : i32
    %c0_i32_1 = arith.constant 0 : i32
    return %c0_i32, %c0_i32_0 : i32, i32
  }
  func.func @transform_4(%arg0: i32) -> (i32, i32) {
    %c0_i32 = arith.constant 0 : i32
    %c0_i32_0 = arith.constant 0 : i32
    %c0_i32_1 = arith.constant 0 : i32
    return %c0_i32, %c0_i32_0 : i32, i32
  }
  func.func @transform_5(%arg0: i32) -> (i32, i32) {
    %c0_i32 = arith.constant 0 : i32
    %c0_i32_0 = arith.constant 0 : i32
    %c0_i32_1 = arith.constant 0 : i32
    return %c0_i32, %c0_i32_0 : i32, i32
  }
  func.func @transform_6(%arg0: i32) -> (i32, i32) {
    %c0_i32 = arith.constant 0 : i32
    %c0_i32_0 = arith.constant 0 : i32
    %c0_i32_1 = arith.constant 0 : i32
    return %c0_i32, %c0_i32_0 : i32, i32
  }
  func.func @transform_7(%arg0: i32) -> (i32, i32) {
    %c0_i32 = arith.constant 0 : i32
    %c0_i32_0 = arith.constant 0 : i32
    %c0_i32_1 = arith.constant 0 : i32
    return %c0_i32, %c0_i32_0 : i32, i32
  }
  func.func @transform_8(%arg0: i32) -> (i32, i32) {
    %c0_i32 = arith.constant 0 : i32
    %c0_i32_0 = arith.constant 0 : i32
    %c0_i32_1 = arith.constant 0 : i32
    return %c0_i32, %c0_i32_0 : i32, i32
  }
  func.func @transform_9(%arg0: i32) -> (i32, i32) {
    %c0_i32 = arith.constant 0 : i32
    %c0_i32_0 = arith.constant 0 : i32
    %c0_i32_1 = arith.constant 0 : i32
    return %c0_i32, %c0_i32_0 : i32, i32
  }
  func.func @transform_10(%arg0: i32) -> (i32, i32) {
    %c0_i32 = arith.constant 0 : i32
    %c0_i32_0 = arith.constant 0 : i32
    %c0_i32_1 = arith.constant 0 : i32
    return %c0_i32, %c0_i32_0 : i32, i32
  }
  func.func @transform_11(%arg0: i32) -> (i32, i32, i32) {
    %c0_i32 = arith.constant 0 : i32
    %c0_i32_0 = arith.constant 0 : i32
    %c0_i32_1 = arith.constant 0 : i32
    return %arg0, %c0_i32, %c0_i32_0 : i32, i32, i32
  }
}

</mosaic_0001>

<llo_original>
// kernel: tpu_custom_call.1
$region0: #{tpu_custom_call.1}
  #allocation0 [shape = 'u32[]', space=smem, size = 0x4, offset = 0x4, fixed_abs, tag = 'smem constant byte address 0x4 - core index']
  #allocation1 [shape = 'u32[144,128]{1,0:T(1,128)}', space=vmem, size = 0x12000, scoped, tag = 'internal scratch']
  %s0 = inlined_call_operand.hbm [shape: f32[2,8,32], index: 0, kind: input, shape index: {}]
  %s1 = inlined_call_operand.vmem [shape: f32[1,32], index: 1, kind: input, shape index: {}]
  %s2 = inlined_call_operand.vmem [shape: f32[1,32], index: 2, kind: input, shape index: {}]
  %s3 = inlined_call_operand.hbm [shape: f32[32,32], index: 3, kind: input, shape index: {}]
  %s4 = inlined_call_operand.vmem [shape: f32[1,32], index: 4, kind: input, shape index: {}]
  %s5 = inlined_call_operand.hbm [shape: f32[32,32], index: 5, kind: input, shape index: {}]
  %s6 = inlined_call_operand.vmem [shape: f32[1,32], index: 6, kind: input, shape index: {}]
  %s7 = inlined_call_operand.hbm [shape: f32[32,32], index: 7, kind: input, shape index: {}]
  %s8 = inlined_call_operand.vmem [shape: f32[1,32], index: 8, kind: input, shape index: {}]
  %s9 = inlined_call_operand.hbm [shape: f32[32,32], index: 9, kind: input, shape index: {}]
  %s10 = inlined_call_operand.vmem [shape: f32[1,32], index: 10, kind: input, shape index: {}]
  %s11 = inlined_call_operand.hbm [shape: f32[2,8,32], index: 11, kind: output, shape index: {}]
  %s12 = sld [smem:[#allocation0]]
  $region97: #{tpu_custom_call.1} parent=0
    _
  %s14 = ssub.s32 1, %s12
  %s15 = scalar_select 0, %s14, %s12
  $region1: #{tpu_custom_call.1} parent=0
    #allocation2 [shape = 'u8[8192]{0}', space=vmem, size = 0x2000, scoped, tag = 'input window, operand 0']
    #allocation3 [shape = 's32[2]{0}', space=sflag, size = 0x8, scoped, tag = 'scoped memory for tpu_custom_call.1']
    #allocation4 [shape = 's32[2]{0}', space=sflag, size = 0x8, scoped, tag = 'scoped memory for tpu_custom_call.1']
    #allocation5 [shape = 'u8[16384]{0}', space=vmem, size = 0x4000, scoped, tag = 'input window, operand 3, single buffered']
    #allocation6 [shape = 's32[1]{0}', space=sflag, size = 0x4, scoped, tag = 'scoped memory for tpu_custom_call.1']
    #allocation7 [shape = 'u8[16384]{0}', space=vmem, size = 0x4000, scoped, tag = 'input window, operand 5, single buffered']
    #allocation8 [shape = 'u8[16384]{0}', space=vmem, size = 0x4000, scoped, tag = 'input window, operand 7, single buffered']
    #allocation9 [shape = 's32[1]{0}', space=sflag, size = 0x4, scoped, tag = 'scoped memory for tpu_custom_call.1']
    #allocation10 [shape = 'u8[16384]{0}', space=vmem, size = 0x4000, scoped, tag = 'input window, operand 9, single buffered']
    #allocation11 [shape = 'u8[8192]{0}', space=vmem, size = 0x2000, scoped, tag = 'output window, operand 0']
    %16 = vsyncpa [#allocation3], 0
    %s17 = scalar_lea.sflag [#allocation3], 1
    %18 = vsyncpa %s17, 0
    %19 = vsyncpa [#allocation6], 0
    %20 = vsyncpa [#allocation9], 0
    %21 = vsyncpa [#allocation4], 0
    %s22 = scalar_lea.sflag [#allocation4], 1
    %23 = vsyncpa %s22, 0
    loop: start=0, step=1, limit=4
    $region2: #{tpu_custom_call.1} parent=1 // loop_pre_header
      _
    $region3: #{tpu_custom_call.1} parent=1 // loop_header
      %s25 = sphi 0, %s29
      %p26 = scmp.ge.s32.totalorder %s25, 4
      %s35 = sphi 0, %s37
      %s38 = sphi 0, %s35
      %s39 = sphi 0, %s38
      %s55 = sphi 0, %s39
      %s59 = sphi 0, %s59
      %s61 = sphi 0, %s59
      %s62 = sphi 0, %s61
      %s76 = sphi 0, %s62
      %s80 = sphi 0, %s80
      %s82 = sphi 0, %s80
      %s83 = sphi 0, %s82
      %s97 = sphi 0, %s83
      %s101 = sphi 0, %s101
      %s103 = sphi 0, %s101
      %s104 = sphi 0, %s103
      %s118 = sphi 0, %s104
      %s122 = sphi 0, %s122
      %s124 = sphi 0, %s122
      %s125 = sphi 0, %s124
      %s139 = sphi 0, %s125
      %s143 = sphi 0, %s143
      %s145 = sphi 0, %s143
      %s146 = sphi 0, %s145
      %s160 = sphi 0, %s146
      %s164 = sphi 0, %s164
      %s166 = sphi 0, %s164
      %s167 = sphi 0, %s166
      %s181 = sphi 0, %s167
      %s185 = sphi 0, %s185
      %s187 = sphi 0, %s185
      %s188 = sphi 0, %s187
      %s202 = sphi 0, %s188
      %s206 = sphi 0, %s206
      %s208 = sphi 0, %s206
      %s209 = sphi 0, %s208
      %s223 = sphi 0, %s209
      %s227 = sphi 0, %s227
      %s229 = sphi 0, %s227
      %s230 = sphi 0, %s229
      %s244 = sphi 0, %s230
      %s248 = sphi 0, %s248
      %s250 = sphi 0, %s248
      %s251 = sphi 0, %s250
      %s265 = sphi 0, %s251
      %s271 = sphi 0, %s273
      %s274 = sphi 0, %s271
      %s275 = sphi 0, %s274
      %s291 = sphi 0, %s275
    $region4: #{tpu_custom_call.1} parent=1 // loop_header_branch
      %28 = sbr.rel (%p26) target = $region8
    $region5: #{tpu_custom_call.1} parent=1 // loop_body
      %s30 = ssub.s32 %s25, 1
      %s31 = ssub.s32 %s25, 2
      %s32 = sadd.s32 %s25, 1
      %s33 = ssub.s32 %s25, %s32
      %p34 = scmp.eq.s32.totalorder %s33, 0
      %s36 = sadd.s32 %s35, 1
      %s37 = scalar_select %p34, %s35, %s36
      %p40 = pneg %p34
      %p41 = scmp.eq.s32.totalorder %s25, 1
      %p42 = por %p40, %p41
      %p43 = scmp.ne.s32.totalorder %s35, %s38
      %p44 = scmp.eq.s32.totalorder %s25, 0
      %p45 = por %p43, %p44
      %p46 = scmp.ne.s32.totalorder %s35, %s38
      %p47 = scmp.eq.s32.totalorder %s30, 1
      %p48 = por %p46, %p47
      %p49 = scmp.ne.s32.totalorder %s38, %s39
      %p50 = scmp.eq.s32.totalorder %s30, 0
      %p51 = por %p49, %p50
      %p52 = scmp.ne.s32.totalorder %s38, %s39
      %p53 = scmp.eq.s32.totalorder %s31, 1
      %p54 = por %p52, %p53
      %p56 = scmp.ne.s32.totalorder %s39, %s55
      %p57 = scmp.eq.s32.totalorder %s31, 0
      %p58 = por %p56, %p57
      %s60 = sadd.s32 %s59, 1
      %p63 = scmp.eq.s32.totalorder %s25, 1
      %p64 = scmp.ne.s32.totalorder %s59, %s61
      %p65 = scmp.eq.s32.totalorder %s25, 0
      %p66 = por %p64, %p65
      %p67 = scmp.ne.s32.totalorder %s59, %s61
      %p68 = scmp.eq.s32.totalorder %s30, 1
      %p69 = por %p67, %p68
      %p70 = scmp.ne.s32.totalorder %s61, %s62
      %p71 = scmp.eq.s32.totalorder %s30, 0
      %p72 = por %p70, %p71
      %p73 = scmp.ne.s32.totalorder %s61, %s62
      %p74 = scmp.eq.s32.totalorder %s31, 1
      %p75 = por %p73, %p74
      %p77 = scmp.ne.s32.totalorder %s62, %s76
      %p78 = scmp.eq.s32.totalorder %s31, 0
      %p79 = por %p77, %p78
      %s81 = sadd.s32 %s80, 1
      %p84 = scmp.eq.s32.totalorder %s25, 1
      %p85 = scmp.ne.s32.totalorder %s80, %s82
      %p86 = scmp.eq.s32.totalorder %s25, 0
      %p87 = por %p85, %p86
      %p88 = scmp.ne.s32.totalorder %s80, %s82
      %p89 = scmp.eq.s32.totalorder %s30, 1
      %p90 = por %p88, %p89
      %p91 = scmp.ne.s32.totalorder %s82, %s83
      %p92 = scmp.eq.s32.totalorder %s30, 0
      %p93 = por %p91, %p92
      %p94 = scmp.ne.s32.totalorder %s82, %s83
      %p95 = scmp.eq.s32.totalorder %s31, 1
      %p96 = por %p94, %p95
      %p98 = scmp.ne.s32.totalorder %s83, %s97
      %p99 = scmp.eq.s32.totalorder %s31, 0
      %p100 = por %p98, %p99
      %s102 = sadd.s32 %s101, 1
      %p105 = scmp.eq.s32.totalorder %s25, 1
      %p106 = scmp.ne.s32.totalorder %s101, %s103
      %p107 = scmp.eq.s32.totalorder %s25, 0
      %p108 = por %p106, %p107
      %p109 = scmp.ne.s32.totalorder %s101, %s103
      %p110 = scmp.eq.s32.totalorder %s30, 1
      %p111 = por %p109, %p110
      %p112 = scmp.ne.s32.totalorder %s103, %s104
      %p113 = scmp.eq.s32.totalorder %s30, 0
      %p114 = por %p112, %p113
      %p115 = scmp.ne.s32.totalorder %s103, %s104
      %p116 = scmp.eq.s32.totalorder %s31, 1
      %p117 = por %p115, %p116
      %p119 = scmp.ne.s32.totalorder %s104, %s118
      %p120 = scmp.eq.s32.totalorder %s31, 0
      %p121 = por %p119, %p120
      %s123 = sadd.s32 %s122, 1
      %p126 = scmp.eq.s32.totalorder %s25, 1
      %p127 = scmp.ne.s32.totalorder %s122, %s124
      %p128 = scmp.eq.s32.totalorder %s25, 0
      %p129 = por %p127, %p128
      %p130 = scmp.ne.s32.totalorder %s122, %s124
      %p131 = scmp.eq.s32.totalorder %s30, 1
      %p132 = por %p130, %p131
      %p133 = scmp.ne.s32.totalorder %s124, %s125
      %p134 = scmp.eq.s32.totalorder %s30, 0
      %p135 = por %p133, %p134
      %p136 = scmp.ne.s32.totalorder %s124, %s125
      %p137 = scmp.eq.s32.totalorder %s31, 1
      %p138 = por %p136, %p137
      %p140 = scmp.ne.s32.totalorder %s125, %s139
      %p141 = scmp.eq.s32.totalorder %s31, 0
      %p142 = por %p140, %p141
      %s144 = sadd.s32 %s143, 1
      %p147 = scmp.eq.s32.totalorder %s25, 1
      %p148 = scmp.ne.s32.totalorder %s143, %s145
      %p149 = scmp.eq.s32.totalorder %s25, 0
      %p150 = por %p148, %p149
      %p151 = scmp.ne.s32.totalorder %s143, %s145
      %p152 = scmp.eq.s32.totalorder %s30, 1
      %p153 = por %p151, %p152
      %p154 = scmp.ne.s32.totalorder %s145, %s146
      %p155 = scmp.eq.s32.totalorder %s30, 0
      %p156 = por %p154, %p155
      %p157 = scmp.ne.s32.totalorder %s145, %s146
      %p158 = scmp.eq.s32.totalorder %s31, 1
      %p159 = por %p157, %p158
      %p161 = scmp.ne.s32.totalorder %s146, %s160
      %p162 = scmp.eq.s32.totalorder %s31, 0
      %p163 = por %p161, %p162
      %s165 = sadd.s32 %s164, 1
      %p168 = scmp.eq.s32.totalorder %s25, 1
      %p169 = scmp.ne.s32.totalorder %s164, %s166
      %p170 = scmp.eq.s32.totalorder %s25, 0
      %p171 = por %p169, %p170
      %p172 = scmp.ne.s32.totalorder %s164, %s166
      %p173 = scmp.eq.s32.totalorder %s30, 1
      %p174 = por %p172, %p173
      %p175 = scmp.ne.s32.totalorder %s166, %s167
      %p176 = scmp.eq.s32.totalorder %s30, 0
      %p177 = por %p175, %p176
      %p178 = scmp.ne.s32.totalorder %s166, %s167
      %p179 = scmp.eq.s32.totalorder %s31, 1
      %p180 = por %p178, %p179
      %p182 = scmp.ne.s32.totalorder %s167, %s181
      %p183 = scmp.eq.s32.totalorder %s31, 0
      %p184 = por %p182, %p183
      %s186 = sadd.s32 %s185, 1
      %p189 = scmp.eq.s32.totalorder %s25, 1
      %p190 = scmp.ne.s32.totalorder %s185, %s187
      %p191 = scmp.eq.s32.totalorder %s25, 0
      %p192 = por %p190, %p191
      %p193 = scmp.ne.s32.totalorder %s185, %s187
      %p194 = scmp.eq.s32.totalorder %s30, 1
      %p195 = por %p193, %p194
      %p196 = scmp.ne.s32.totalorder %s187, %s188
      %p197 = scmp.eq.s32.totalorder %s30, 0
      %p198 = por %p196, %p197
      %p199 = scmp.ne.s32.totalorder %s187, %s188
      %p200 = scmp.eq.s32.totalorder %s31, 1
      %p201 = por %p199, %p200
      %p203 = scmp.ne.s32.totalorder %s188, %s202
      %p204 = scmp.eq.s32.totalorder %s31, 0
      %p205 = por %p203, %p204
      %s207 = sadd.s32 %s206, 1
      %p210 = scmp.eq.s32.totalorder %s25, 1
      %p211 = scmp.ne.s32.totalorder %s206, %s208
      %p212 = scmp.eq.s32.totalorder %s25, 0
      %p213 = por %p211, %p212
      %p214 = scmp.ne.s32.totalorder %s206, %s208
      %p215 = scmp.eq.s32.totalorder %s30, 1
      %p216 = por %p214, %p215
      %p217 = scmp.ne.s32.totalorder %s208, %s209
      %p218 = scmp.eq.s32.totalorder %s30, 0
      %p219 = por %p217, %p218
      %p220 = scmp.ne.s32.totalorder %s208, %s209
      %p221 = scmp.eq.s32.totalorder %s31, 1
      %p222 = por %p220, %p221
      %p224 = scmp.ne.s32.totalorder %s209, %s223
      %p225 = scmp.eq.s32.totalorder %s31, 0
      %p226 = por %p224, %p225
      %s228 = sadd.s32 %s227, 1
      %p231 = scmp.eq.s32.totalorder %s25, 1
      %p232 = scmp.ne.s32.totalorder %s227, %s229
      %p233 = scmp.eq.s32.totalorder %s25, 0
      %p234 = por %p232, %p233
      %p235 = scmp.ne.s32.totalorder %s227, %s229
      %p236 = scmp.eq.s32.totalorder %s30, 1
      %p237 = por %p235, %p236
      %p238 = scmp.ne.s32.totalorder %s229, %s230
      %p239 = scmp.eq.s32.totalorder %s30, 0
      %p240 = por %p238, %p239
      %p241 = scmp.ne.s32.totalorder %s229, %s230
      %p242 = scmp.eq.s32.totalorder %s31, 1
      %p243 = por %p241, %p242
      %p245 = scmp.ne.s32.totalorder %s230, %s244
      %p246 = scmp.eq.s32.totalorder %s31, 0
      %p247 = por %p245, %p246
      %s249 = sadd.s32 %s248, 1
      %p252 = scmp.eq.s32.totalorder %s25, 1
      %p253 = scmp.ne.s32.totalorder %s248, %s250
      %p254 = scmp.eq.s32.totalorder %s25, 0
      %p255 = por %p253, %p254
      %p256 = scmp.ne.s32.totalorder %s248, %s250
      %p257 = scmp.eq.s32.totalorder %s30, 1
      %p258 = por %p256, %p257
      %p259 = scmp.ne.s32.totalorder %s250, %s251
      %p260 = scmp.eq.s32.totalorder %s30, 0
      %p261 = por %p259, %p260
      %p262 = scmp.ne.s32.totalorder %s250, %s251
      %p263 = scmp.eq.s32.totalorder %s31, 1
      %p264 = por %p262, %p263
      %p266 = scmp.ne.s32.totalorder %s251, %s265
      %p267 = scmp.eq.s32.totalorder %s31, 0
      %p268 = por %p266, %p267
      %s269 = ssub.s32 %s25, %s32
      %p270 = scmp.eq.s32.totalorder %s269, 0
      %s272 = sadd.s32 %s271, 1
      %s273 = scalar_select %p270, %s271, %s272
      %p276 = pneg %p270
      %p277 = scmp.eq.s32.totalorder %s25, 1
      %p278 = por %p276, %p277
      %p279 = scmp.ne.s32.totalorder %s271, %s274
      %p280 = scmp.eq.s32.totalorder %s25, 0
      %p281 = por %p279, %p280
      %p282 = scmp.ne.s32.totalorder %s271, %s274
      %p283 = scmp.eq.s32.totalorder %s30, 1
      %p284 = por %p282, %p283
      %p285 = scmp.ne.s32.totalorder %s274, %s275
      %p286 = scmp.eq.s32.totalorder %s30, 0
      %p287 = por %p285, %p286
      %p288 = scmp.ne.s32.totalorder %s274, %s275
      %p289 = scmp.eq.s32.totalorder %s31, 1
      %p290 = por %p288, %p289
      %p292 = scmp.ne.s32.totalorder %s275, %s291
      %p293 = scmp.eq.s32.totalorder %s31, 0
      %p294 = por %p292, %p293
      %p295 = scmp.le.s32.totalorder 1, %s25
      %p296 = scmp.lt.s32.totalorder %s25, 3
      %p297 = pnand %p295, %p296
      %p298 = pneg %p297
      // Predicated region
      $region9: #{tpu_custom_call.1} parent=5 // pred_check
        _
      $region10: #{tpu_custom_call.1} parent=5 // pred_check_branch
        %300 = sbr.rel (%p297) target = $region12
      $region11: #{tpu_custom_call.1} parent=5 // pred_region
        %s301 = ssub.s32 %s25, 1
        // Predicated region
        $region13: #{tpu_custom_call.1} parent=11 // pred_check
          %p302 = pneg %p72
        $region14: #{tpu_custom_call.1} parent=11 // pred_check_branch
          %304 = sbr.rel (%p302) target = $region16
        $region15: #{tpu_custom_call.1} parent=11 // pred_region
          _
        $region16: #{tpu_custom_call.1} parent=11 // pred_fallthru
          _
        // Predicated region
        $region17: #{tpu_custom_call.1} parent=11 // pred_check
          %p305 = pneg %p93
        $region18: #{tpu_custom_call.1} parent=11 // pred_check_branch
          %307 = sbr.rel (%p305) target = $region20
        $region19: #{tpu_custom_call.1} parent=11 // pred_region
          _
        $region20: #{tpu_custom_call.1} parent=11 // pred_fallthru
          _
        // Predicated region
        $region21: #{tpu_custom_call.1} parent=11 // pred_check
          %p308 = pneg %p114
        $region22: #{tpu_custom_call.1} parent=11 // pred_check_branch
          %310 = sbr.rel (%p308) target = $region24
        $region23: #{tpu_custom_call.1} parent=11 // pred_region
          %s312 = ssub.s32 512, 512
          %313 = vsyncadd [#allocation6], %s312
          %s314 = sshll.u32 [#allocation5], 4
          %s315 = int_to_ptr.vmem [resolvable:$true] %s314
          %320 = dma.hbm_to_vmem [thread:$0]  %s3, 512, %s315, [#allocation6], 128, 128, 8
        $region24: #{tpu_custom_call.1} parent=11 // pred_fallthru
          _
        // Predicated region
        $region25: #{tpu_custom_call.1} parent=11 // pred_check
          %p321 = pneg %p135
        $region26: #{tpu_custom_call.1} parent=11 // pred_check_branch
          %323 = sbr.rel (%p321) target = $region28
        $region27: #{tpu_custom_call.1} parent=11 // pred_region
          _
        $region28: #{tpu_custom_call.1} parent=11 // pred_fallthru
          _
        // Predicated region
        $region29: #{tpu_custom_call.1} parent=11 // pred_check
          %p324 = pneg %p156
        $region30: #{tpu_custom_call.1} parent=11 // pred_check_branch
          %326 = sbr.rel (%p324) target = $region32
        $region31: #{tpu_custom_call.1} parent=11 // pred_region
          %s328 = ssub.s32 512, 512
          %329 = vsyncadd [#allocation6], %s328
          %s330 = sshll.u32 [#allocation7], 4
          %s331 = int_to_ptr.vmem [resolvable:$true] %s330
          %336 = dma.hbm_to_vmem [thread:$0]  %s5, 512, %s331, [#allocation6], 128, 128, 8
        $region32: #{tpu_custom_call.1} parent=11 // pred_fallthru
          _
        // Predicated region
        $region33: #{tpu_custom_call.1} parent=11 // pred_check
          %p337 = pneg %p177
        $region34: #{tpu_custom_call.1} parent=11 // pred_check_branch
          %339 = sbr.rel (%p337) target = $region36
        $region35: #{tpu_custom_call.1} parent=11 // pred_region
          _
        $region36: #{tpu_custom_call.1} parent=11 // pred_fallthru
          _
        // Predicated region
        $region37: #{tpu_custom_call.1} parent=11 // pred_check
          %p340 = pneg %p198
        $region38: #{tpu_custom_call.1} parent=11 // pred_check_branch
          %342 = sbr.rel (%p340) target = $region40
        $region39: #{tpu_custom_call.1} parent=11 // pred_region
          %s344 = ssub.s32 512, 512
          %345 = vsyncadd [#allocation9], %s344
          %s346 = sshll.u32 [#allocation8], 4
          %s347 = int_to_ptr.vmem [resolvable:$true] %s346
          %352 = dma.hbm_to_vmem [thread:$0]  %s7, 512, %s347, [#allocation9], 128, 128, 8
        $region40: #{tpu_custom_call.1} parent=11 // pred_fallthru
          _
        // Predicated region
        $region41: #{tpu_custom_call.1} parent=11 // pred_check
          %p353 = pneg %p219
        $region42: #{tpu_custom_call.1} parent=11 // pred_check_branch
          %355 = sbr.rel (%p353) target = $region44
        $region43: #{tpu_custom_call.1} parent=11 // pred_region
          _
        $region44: #{tpu_custom_call.1} parent=11 // pred_fallthru
          _
        // Predicated region
        $region45: #{tpu_custom_call.1} parent=11 // pred_check
          %p356 = pneg %p240
        $region46: #{tpu_custom_call.1} parent=11 // pred_check_branch
          %358 = sbr.rel (%p356) target = $region48
        $region47: #{tpu_custom_call.1} parent=11 // pred_region
          %s360 = ssub.s32 512, 512
          %361 = vsyncadd [#allocation9], %s360
          %s362 = sshll.u32 [#allocation10], 4
          %s363 = int_to_ptr.vmem [resolvable:$true] %s362
          %368 = dma.hbm_to_vmem [thread:$0]  %s9, 512, %s363, [#allocation9], 128, 128, 8
        $region48: #{tpu_custom_call.1} parent=11 // pred_fallthru
          _
        // Predicated region
        $region49: #{tpu_custom_call.1} parent=11 // pred_check
          %p369 = pneg %p261
        $region50: #{tpu_custom_call.1} parent=11 // pred_check_branch
          %371 = sbr.rel (%p369) target = $region52
        $region51: #{tpu_custom_call.1} parent=11 // pred_region
          _
        $region52: #{tpu_custom_call.1} parent=11 // pred_fallthru
          _
      $region12: #{tpu_custom_call.1} parent=5 // pred_fallthru
        _
      %p372 = scmp.lt.s32.totalorder %s25, 2
      // Predicated region
      $region53: #{tpu_custom_call.1} parent=5 // pred_check
        %p373 = pneg %p372
      $region54: #{tpu_custom_call.1} parent=5 // pred_check_branch
        %375 = sbr.rel (%p373) target = $region56
      $region55: #{tpu_custom_call.1} parent=5 // pred_region
        // Predicated region
        $region57: #{tpu_custom_call.1} parent=55 // pred_check
          %p376 = pneg %p45
        $region58: #{tpu_custom_call.1} parent=55 // pred_check_branch
          %378 = sbr.rel (%p376) target = $region60
        $region59: #{tpu_custom_call.1} parent=55 // pred_region
          %s379 = sand.u32 %s35, 1
          %s380 = scalar_lea.sflag [#allocation3], %s379
          %s381 = sand.u32 %s35, 1
          %s382 = smul.addr %s381, 8
          %s383 = scalar_lea.vmem [#allocation2], %s382
          %s385 = ssub.s32 128, 128
          %386 = vsyncadd %s380, %s385
          %s387 = smul.addr %s25, 128
          %s388 = scalar_lea.hbm %s0, %s387
          %s390 = sshll.u32 %s383, 4
          %s391 = int_to_ptr.vmem [resolvable:$true] %s390
          %393 = dma.hbm_to_vmem [thread:$0]  %s388, 128, %s391, %s380
        $region60: #{tpu_custom_call.1} parent=55 // pred_fallthru
          _
      $region56: #{tpu_custom_call.1} parent=5 // pred_fallthru
        _
      %p394 = scmp.le.s32.totalorder 1, %s25
      %p395 = scmp.lt.s32.totalorder %s25, 3
      %p396 = pnand %p394, %p395
      %p397 = pneg %p396
      // Predicated region
      $region61: #{tpu_custom_call.1} parent=5 // pred_check
        _
      $region62: #{tpu_custom_call.1} parent=5 // pred_check_branch
        %399 = sbr.rel (%p396) target = $region64
      $region63: #{tpu_custom_call.1} parent=5 // pred_region
        %s400 = ssub.s32 %s25, 1
        %s401 = sand.u32 %s38, 1
        %s402 = scalar_lea.sflag [#allocation3], %s401
        %s403 = sand.u32 %s38, 1
        %s404 = smul.addr %s403, 8
        %s405 = scalar_lea.vmem [#allocation2], %s404
        // Predicated region
        $region65: #{tpu_custom_call.1} parent=63 // pred_check
          %p406 = pneg %p51
        $region66: #{tpu_custom_call.1} parent=63 // pred_check_branch
          %408 = sbr.rel (%p406) target = $region68
        $region67: #{tpu_custom_call.1} parent=63 // pred_region
          %409 = dma.done %s402, 128
        $region68: #{tpu_custom_call.1} parent=63 // pred_fallthru
          _
        // Predicated region
        $region69: #{tpu_custom_call.1} parent=63 // pred_check
          %p410 = pneg %p114
        $region70: #{tpu_custom_call.1} parent=63 // pred_check_branch
          %412 = sbr.rel (%p410) target = $region72
        $region71: #{tpu_custom_call.1} parent=63 // pred_region
          %413 = dma.done [#allocation6], 512
        $region72: #{tpu_custom_call.1} parent=63 // pred_fallthru
          _
        // Predicated region
        $region73: #{tpu_custom_call.1} parent=63 // pred_check
          %p414 = pneg %p156
        $region74: #{tpu_custom_call.1} parent=63 // pred_check_branch
          %416 = sbr.rel (%p414) target = $region76
        $region75: #{tpu_custom_call.1} parent=63 // pred_region
          %417 = dma.done [#allocation6], 512
        $region76: #{tpu_custom_call.1} parent=63 // pred_fallthru
          _
        // Predicated region
        $region77: #{tpu_custom_call.1} parent=63 // pred_check
          %p418 = pneg %p198
        $region78: #{tpu_custom_call.1} parent=63 // pred_check_branch
          %420 = sbr.rel (%p418) target = $region80
        $region79: #{tpu_custom_call.1} parent=63 // pred_region
          %421 = dma.done [#allocation9], 512
        $region80: #{tpu_custom_call.1} parent=63 // pred_fallthru
          _
        // Predicated region
        $region81: #{tpu_custom_call.1} parent=63 // pred_check
          %p422 = pneg %p240
        $region82: #{tpu_custom_call.1} parent=63 // pred_check_branch
          %424 = sbr.rel (%p422) target = $region84
        $region83: #{tpu_custom_call.1} parent=63 // pred_region
          %425 = dma.done [#allocation9], 512
        $region84: #{tpu_custom_call.1} parent=63 // pred_fallthru
          _
        %s426 = sand.u32 %s38, 1
        %s427 = scalar_lea.sflag [#allocation3], %s426
        %s428 = sand.u32 %s38, 1
        %s429 = smul.addr %s428, 8
        %s430 = scalar_lea.vmem [#allocation2], %s429
        %p431 = pneg %p51
        %p432 = pneg %p48
        %p433 = pneg %p72
        %p434 = pneg %p69
        %p435 = pneg %p93
        %p436 = pneg %p90
        %p437 = pneg %p114
        %p438 = pneg %p111
        %p439 = pneg %p135
        %p440 = pneg %p132
        %p441 = pneg %p156
        %p442 = pneg %p153
        %p443 = pneg %p177
        %p444 = pneg %p174
        %p445 = pneg %p198
        %p446 = pneg %p195
        %p447 = pneg %p219
        %p448 = pneg %p216
        %p449 = pneg %p240
        %p450 = pneg %p237
        %p451 = pneg %p261
        %p452 = pneg %p258
        %p453 = pneg %p287
        %p454 = pneg %p284
        %s455 = sand.u32 %s274, 1
        %s456 = scalar_lea.sflag [#allocation4], %s455
        %s457 = sand.u32 %s274, 1
        %s458 = smul.addr %s457, 8
        %s459 = scalar_lea.vmem [#allocation11], %s458
        %v460 = vld [vmem:[%s405] sm:$0xff]
        %v461 = vld [vmem:[%s1] sm:$0x1]
        %v462 = vld [vmem:[%s2] sm:$0x1]
        %vm463 = vcmask 261120
        %v464 = vsel %vm463, %v460, 0.0
        %465 = vadd.xlane.f32.xlu0 %v464
        %v466 = vpop.xlane.xlu0 %465
        %v467 = vrcp.pop 32.0
        %v468 = vmul.f32 %v466, %v467
        %v469 = vsub.f32 %v460, %v468
        %v470 = vmul.f32 %v469, %v469
        %v471 = vsel %vm463, %v470, 0.0
        %472 = vadd.xlane.f32.xlu0 %v471
        %v473 = vpop.xlane.xlu0 %472
        %v474 = vmul.f32 %v473, %v467
        %v475 = vadd.f32 %v474, 1e-05
        %v476 = vrsqrt.pop %v475
        %v477 = vmul.f32 %v469, %v476
        %v479 = vlaneseq
        %v480 = vshrl.u32 %v479, 7
        %v481 = vsub.s32 0, %v480
        %v482 = vrot.slane %v461, %v481
        %v484 = vmul.f32 %v477, %v482
        %v486 = vlaneseq
        %v487 = vshrl.u32 %v486, 7
        %v488 = vsub.s32 0, %v487
        %v489 = vrot.slane %v462, %v488
        %v491 = vadd.f32 %v484, %v489
        %v492 = vld [vmem:[#allocation5] sm:$0xff]
        %v493 = vld [vmem:[#allocation5 + $0x8] sm:$0xff]
        %v494 = vld [vmem:[#allocation5 + $0x10] sm:$0xff]
        %v495 = vld [vmem:[#allocation5 + $0x18] sm:$0xff]
        %v496 = vld [vmem:[%s4] sm:$0x1]
        %v498 = vlaneseq
        %v499 = vshrl.u32 %v498, 7
        %v500 = vsub.s32 0, %v499
        %v501 = vrot.slane %v496, %v500
        %v504 = vsel %vm463, %v491, 0
        %506 = vmatprep.subr.mxu0 0.0
        %507 = vmatpush1.msra.mxu0 0.0
        %508 = vmatprep.subr.mxu0 0.0
        %509 = vmatpush1.msra.mxu0 0.0
        %510 = vmatprep.subr.mxu0 0.0
        %511 = vmatpush1.msra.mxu0 0.0
        %512 = vmatprep.subr.mxu0 0.0
        %513 = vmatpush1.msra.mxu0 0.0
        %514 = vmatprep.subr.mxu0 0.0
        %515 = vmatpush1.msra.mxu0 0.0
        %516 = vmatprep.subr.mxu0 0.0
        %517 = vmatpush1.msra.mxu0 0.0
        %518 = vmatprep.subr.mxu0 0.0
        %519 = vmatpush1.msra.mxu0 0.0
        %520 = vmatprep.subr.mxu0 0.0
        %521 = vmatpush1.msra.mxu0 0.0
        %522 = vmatprep.subr.mxu0 0.0
        %523 = vmatpush1.msra.mxu0 0.0
        %524 = vmatprep.subr.mxu0 0.0
        %525 = vmatpush1.msra.mxu0 0.0
        %526 = vmatprep.subr.mxu0 0.0
        %527 = vmatpush1.msra.mxu0 0.0
        %528 = vmatprep.subr.mxu0 0.0
        %529 = vmatpush1.msra.mxu0 0.0
        %530 = vmatprep.subr.mxu0 0.0
        %531 = vmatpush1.msra.mxu0 %v495
        %532 = vmatprep.subr.mxu0 0.0
        %533 = vmatpush1.msra.mxu0 %v494
        %534 = vmatprep.subr.mxu0 0.0
        %535 = vmatpush1.msra.mxu0 %v493
        %536 = vmatprep.subr.mxu0 0.0
        %537 = vmatpush1.msra.mxu0 %v492
        %538 = vmatprep.subr.mxu0 0.0
        %539 = vmatpush2.msra.mxu0 0.0
        %540 = vmatprep.subr.mxu0 0.0
        %541 = vmatpush2.msra.mxu0 0.0
        %542 = vmatprep.subr.mxu0 0.0
        %543 = vmatpush2.msra.mxu0 0.0
        %544 = vmatprep.subr.mxu0 0.0
        %545 = vmatpush2.msra.mxu0 0.0
        %546 = vmatprep.subr.mxu0 0.0
        %547 = vmatpush2.msra.mxu0 0.0
        %548 = vmatprep.subr.mxu0 0.0
        %549 = vmatpush2.msra.mxu0 0.0
        %550 = vmatprep.subr.mxu0 0.0
        %551 = vmatpush2.msra.mxu0 0.0
        %552 = vmatprep.subr.mxu0 0.0
        %553 = vmatpush2.msra.mxu0 0.0
        %554 = vmatprep.subr.mxu0 0.0
        %555 = vmatpush2.msra.mxu0 0.0
        %556 = vmatprep.subr.mxu0 0.0
        %557 = vmatpush2.msra.mxu0 0.0
        %558 = vmatprep.subr.mxu0 0.0
        %559 = vmatpush2.msra.mxu0 0.0
        %560 = vmatprep.subr.mxu0 0.0
        %561 = vmatpush2.msra.mxu0 0.0
        %562 = vmatprep.subr.mxu0 0.0
        %563 = vmatpush2.msra.mxu0 0.0
        %564 = vmatprep.subr.mxu0 0.0
        %565 = vmatpush2.msra.mxu0 0.0
        %566 = vmatprep.subr.mxu0 0.0
        %567 = vmatpush2.msra.mxu0 0.0
        %568 = vmatprep.subr.mxu0 0.0
        %569 = vmatpush2.msra.mxu0 0.0
        %570 = vmatprep.mubr.f32.mxu0 0.0
        %571 = vmatmul.mubr.f32.gmra.mxu0 %v504
        %v572 = vpop.f32.mrf.mxu0
        %v573 = vadd.f32 %v501, %v572
        %v574 = vpop.f32.mrf.mxu0
        %575 = vdwg.mxu0
        %v576 = vld [vmem:[#allocation7] sm:$0xff]
        %v577 = vld [vmem:[#allocation7 + $0x8] sm:$0xff]
        %v578 = vld [vmem:[#allocation7 + $0x10] sm:$0xff]
        %v579 = vld [vmem:[#allocation7 + $0x18] sm:$0xff]
        %v580 = vld [vmem:[%s6] sm:$0x1]
        %v582 = vlaneseq
        %v583 = vshrl.u32 %v582, 7
        %v584 = vsub.s32 0, %v583
        %v585 = vrot.slane %v580, %v584
        %587 = vmatprep.subr.mxu0 0.0
        %588 = vmatpush1.msra.mxu0 0.0
        %589 = vmatprep.subr.mxu0 0.0
        %590 = vmatpush1.msra.mxu0 0.0
        %591 = vmatprep.subr.mxu0 0.0
        %592 = vmatpush1.msra.mxu0 0.0
        %593 = vmatprep.subr.mxu0 0.0
        %594 = vmatpush1.msra.mxu0 0.0
        %595 = vmatprep.subr.mxu0 0.0
        %596 = vmatpush1.msra.mxu0 0.0
        %597 = vmatprep.subr.mxu0 0.0
        %598 = vmatpush1.msra.mxu0 0.0
        %599 = vmatprep.subr.mxu0 0.0
        %600 = vmatpush1.msra.mxu0 0.0
        %601 = vmatprep.subr.mxu0 0.0
        %602 = vmatpush1.msra.mxu0 0.0
        %603 = vmatprep.subr.mxu0 0.0
        %604 = vmatpush1.msra.mxu0 0.0
        %605 = vmatprep.subr.mxu0 0.0
        %606 = vmatpush1.msra.mxu0 0.0
        %607 = vmatprep.subr.mxu0 0.0
        %608 = vmatpush1.msra.mxu0 0.0
        %609 = vmatprep.subr.mxu0 0.0
        %610 = vmatpush1.msra.mxu0 0.0
        %611 = vmatprep.subr.mxu0 0.0
        %612 = vmatpush1.msra.mxu0 %v579
        %613 = vmatprep.subr.mxu0 0.0
        %614 = vmatpush1.msra.mxu0 %v578
        %615 = vmatprep.subr.mxu0 0.0
        %616 = vmatpush1.msra.mxu0 %v577
        %617 = vmatprep.subr.mxu0 0.0
        %618 = vmatpush1.msra.mxu0 %v576
        %619 = vmatprep.subr.mxu0 0.0
        %620 = vmatpush2.msra.mxu0 0.0
        %621 = vmatprep.subr.mxu0 0.0
        %622 = vmatpush2.msra.mxu0 0.0
        %623 = vmatprep.subr.mxu0 0.0
        %624 = vmatpush2.msra.mxu0 0.0
        %625 = vmatprep.subr.mxu0 0.0
        %626 = vmatpush2.msra.mxu0 0.0
        %627 = vmatprep.subr.mxu0 0.0
        %628 = vmatpush2.msra.mxu0 0.0
        %629 = vmatprep.subr.mxu0 0.0
        %630 = vmatpush2.msra.mxu0 0.0
        %631 = vmatprep.subr.mxu0 0.0
        %632 = vmatpush2.msra.mxu0 0.0
        %633 = vmatprep.subr.mxu0 0.0
        %634 = vmatpush2.msra.mxu0 0.0
        %635 = vmatprep.subr.mxu0 0.0
        %636 = vmatpush2.msra.mxu0 0.0
        %637 = vmatprep.subr.mxu0 0.0
        %638 = vmatpush2.msra.mxu0 0.0
        %639 = vmatprep.subr.mxu0 0.0
        %640 = vmatpush2.msra.mxu0 0.0
        %641 = vmatprep.subr.mxu0 0.0
        %642 = vmatpush2.msra.mxu0 0.0
        %643 = vmatprep.subr.mxu0 0.0
        %644 = vmatpush2.msra.mxu0 0.0
        %645 = vmatprep.subr.mxu0 0.0
        %646 = vmatpush2.msra.mxu0 0.0
        %647 = vmatprep.subr.mxu0 0.0
        %648 = vmatpush2.msra.mxu0 0.0
        %649 = vmatprep.subr.mxu0 0.0
        %650 = vmatpush2.msra.mxu0 0.0
        %651 = vmatprep.mubr.f32.mxu0 0.0
        %652 = vmatmul.mubr.f32.gmra.mxu0 %v504
        %v653 = vpop.f32.mrf.mxu0
        %v654 = vadd.f32 %v585, %v653
        %v655 = vpop.f32.mrf.mxu0
        %656 = vdwg.mxu0
        %v657 = vld [vmem:[#allocation8] sm:$0xff]
        %v658 = vld [vmem:[#allocation8 + $0x8] sm:$0xff]
        %v659 = vld [vmem:[#allocation8 + $0x10] sm:$0xff]
        %v660 = vld [vmem:[#allocation8 + $0x18] sm:$0xff]
        %v661 = vld [vmem:[%s8] sm:$0x1]
        %v663 = vlaneseq
        %v664 = vshrl.u32 %v663, 7
        %v665 = vsub.s32 0, %v664
        %v666 = vrot.slane %v661, %v665
        %668 = vmatprep.subr.mxu0 0.0
        %669 = vmatpush1.msra.mxu0 0.0
        %670 = vmatprep.subr.mxu0 0.0
        %671 = vmatpush1.msra.mxu0 0.0
        %672 = vmatprep.subr.mxu0 0.0
        %673 = vmatpush1.msra.mxu0 0.0
        %674 = vmatprep.subr.mxu0 0.0
        %675 = vmatpush1.msra.mxu0 0.0
        %676 = vmatprep.subr.mxu0 0.0
        %677 = vmatpush1.msra.mxu0 0.0
        %678 = vmatprep.subr.mxu0 0.0
        %679 = vmatpush1.msra.mxu0 0.0
        %680 = vmatprep.subr.mxu0 0.0
        %681 = vmatpush1.msra.mxu0 0.0
        %682 = vmatprep.subr.mxu0 0.0
        %683 = vmatpush1.msra.mxu0 0.0
        %684 = vmatprep.subr.mxu0 0.0
        %685 = vmatpush1.msra.mxu0 0.0
        %686 = vmatprep.subr.mxu0 0.0
        %687 = vmatpush1.msra.mxu0 0.0
        %688 = vmatprep.subr.mxu0 0.0
        %689 = vmatpush1.msra.mxu0 0.0
        %690 = vmatprep.subr.mxu0 0.0
        %691 = vmatpush1.msra.mxu0 0.0
        %692 = vmatprep.subr.mxu0 0.0
        %693 = vmatpush1.msra.mxu0 %v660
        %694 = vmatprep.subr.mxu0 0.0
        %695 = vmatpush1.msra.mxu0 %v659
        %696 = vmatprep.subr.mxu0 0.0
        %697 = vmatpush1.msra.mxu0 %v658
        %698 = vmatprep.subr.mxu0 0.0
        %699 = vmatpush1.msra.mxu0 %v657
        %700 = vmatprep.subr.mxu0 0.0
        %701 = vmatpush2.msra.mxu0 0.0
        %702 = vmatprep.subr.mxu0 0.0
        %703 = vmatpush2.msra.mxu0 0.0
        %704 = vmatprep.subr.mxu0 0.0
        %705 = vmatpush2.msra.mxu0 0.0
        %706 = vmatprep.subr.mxu0 0.0
        %707 = vmatpush2.msra.mxu0 0.0
        %708 = vmatprep.subr.mxu0 0.0
        %709 = vmatpush2.msra.mxu0 0.0
        %710 = vmatprep.subr.mxu0 0.0
        %711 = vmatpush2.msra.mxu0 0.0
        %712 = vmatprep.subr.mxu0 0.0
        %713 = vmatpush2.msra.mxu0 0.0
        %714 = vmatprep.subr.mxu0 0.0
        %715 = vmatpush2.msra.mxu0 0.0
        %716 = vmatprep.subr.mxu0 0.0
        %717 = vmatpush2.msra.mxu0 0.0
        %718 = vmatprep.subr.mxu0 0.0
        %719 = vmatpush2.msra.mxu0 0.0
        %720 = vmatprep.subr.mxu0 0.0
        %721 = vmatpush2.msra.mxu0 0.0
        %722 = vmatprep.subr.mxu0 0.0
        %723 = vmatpush2.msra.mxu0 0.0
        %724 = vmatprep.subr.mxu0 0.0
        %725 = vmatpush2.msra.mxu0 0.0
        %726 = vmatprep.subr.mxu0 0.0
        %727 = vmatpush2.msra.mxu0 0.0
        %728 = vmatprep.subr.mxu0 0.0
        %729 = vmatpush2.msra.mxu0 0.0
        %730 = vmatprep.subr.mxu0 0.0
        %731 = vmatpush2.msra.mxu0 0.0
        %732 = vmatprep.mubr.f32.mxu0 0.0
        %733 = vmatmul.mubr.f32.gmra.mxu0 %v504
        %v734 = vpop.f32.mrf.mxu0
        %v735 = vadd.f32 %v666, %v734
        %v736 = vpop.f32.mrf.mxu0
        %737 = vdwg.mxu0
        %vm738 = vcmask 64512
        %v740 = vsel %vm738, %v573, 0
        %v743 = vsel %vm738, %v654, 0
        %745 = vmatprep.subr.mxu0 0.0
        %746 = vmatpush1.xpose.msra.mxu0 0.0
        %747 = vmatprep.subr.mxu0 0.0
        %748 = vmatpush1.xpose.msra.mxu0 0.0
        %749 = vmatprep.subr.mxu0 0.0
        %750 = vmatpush1.xpose.msra.mxu0 0.0
        %751 = vmatprep.subr.mxu0 0.0
        %752 = vmatpush1.xpose.msra.mxu0 0.0
        %753 = vmatprep.subr.mxu0 0.0
        %754 = vmatpush1.xpose.msra.mxu0 0.0
        %755 = vmatprep.subr.mxu0 0.0
        %756 = vmatpush1.xpose.msra.mxu0 0.0
        %757 = vmatprep.subr.mxu0 0.0
        %758 = vmatpush1.xpose.msra.mxu0 0.0
        %759 = vmatprep.subr.mxu0 0.0
        %760 = vmatpush1.xpose.msra.mxu0 0.0
        %761 = vmatprep.subr.mxu0 0.0
        %762 = vmatpush1.xpose.msra.mxu0 0.0
        %763 = vmatprep.subr.mxu0 0.0
        %764 = vmatpush1.xpose.msra.mxu0 0.0
        %765 = vmatprep.subr.mxu0 0.0
        %766 = vmatpush1.xpose.msra.mxu0 0.0
        %767 = vmatprep.subr.mxu0 0.0
        %768 = vmatpush1.xpose.msra.mxu0 0.0
        %769 = vmatprep.subr.mxu0 0.0
        %770 = vmatpush1.xpose.msra.mxu0 0.0
        %771 = vmatprep.subr.mxu0 0.0
        %772 = vmatpush1.xpose.msra.mxu0 0.0
        %773 = vmatprep.subr.mxu0 0.0
        %774 = vmatpush1.xpose.msra.mxu0 0.0
        %775 = vmatprep.subr.mxu0 0.0
        %776 = vmatpush1.xpose.msra.mxu0 %v743
        %777 = vmatprep.subr.mxu0 0.0
        %778 = vmatpush2.xpose.msra.mxu0 0.0
        %779 = vmatprep.subr.mxu0 0.0
        %780 = vmatpush2.xpose.msra.mxu0 0.0
        %781 = vmatprep.subr.mxu0 0.0
        %782 = vmatpush2.xpose.msra.mxu0 0.0
        %783 = vmatprep.subr.mxu0 0.0
        %784 = vmatpush2.xpose.msra.mxu0 0.0
        %785 = vmatprep.subr.mxu0 0.0
        %786 = vmatpush2.xpose.msra.mxu0 0.0
        %787 = vmatprep.subr.mxu0 0.0
        %788 = vmatpush2.xpose.msra.mxu0 0.0
        %789 = vmatprep.subr.mxu0 0.0
        %790 = vmatpush2.xpose.msra.mxu0 0.0
        %791 = vmatprep.subr.mxu0 0.0
        %792 = vmatpush2.xpose.msra.mxu0 0.0
        %793 = vmatprep.subr.mxu0 0.0
        %794 = vmatpush2.xpose.msra.mxu0 0.0
        %795 = vmatprep.subr.mxu0 0.0
        %796 = vmatpush2.xpose.msra.mxu0 0.0
        %797 = vmatprep.subr.mxu0 0.0
        %798 = vmatpush2.xpose.msra.mxu0 0.0
        %799 = vmatprep.subr.mxu0 0.0
        %800 = vmatpush2.xpose.msra.mxu0 0.0
        %801 = vmatprep.subr.mxu0 0.0
        %802 = vmatpush2.xpose.msra.mxu0 0.0
        %803 = vmatprep.subr.mxu0 0.0
        %804 = vmatpush2.xpose.msra.mxu0 0.0
        %805 = vmatprep.subr.mxu0 0.0
        %806 = vmatpush2.xpose.msra.mxu0 0.0
        %807 = vmatprep.subr.mxu0 0.0
        %808 = vmatpush2.xpose.msra.mxu0 0.0
        %809 = vmatprep.mubr.f32.mxu0 0.0
        %810 = vmatmul.mubr.f32.gmra.mxu0 %v740
        %v811 = vpop.f32.mrf.mxu0
        %v812 = vadd.f32 0.0, %v811
        %v813 = vpop.f32.mrf.mxu0
        %814 = vdwg.mxu0
        %v815 = vmul.f32 %v812, 0.35355338
        %v816 = vsel %vm738, %v815, -inf
        %817 = vmax.xlane.f32.xlu0 %v816
        %v818 = vpop.xlane.xlu0 %817
        %v819 = vsub.f32 %v815, %v818
        %v820 = vmul.f32 %v819, 1.442695
        %v821 = vpow.pop %v820
        %v822 = vsel %vm738, %v821, 0.0
        %823 = vadd.xlane.f32.xlu0 %v822
        %v824 = vpop.xlane.xlu0 %823
        %v825 = vrcp.pop %v824
        %v826 = vmul.f32 %v821, %v825
        %v828 = vsel %vm738, %v826, 0
        %830 = vmatprep.subr.mxu0 0.0
        %831 = vmatpush1.msra.mxu0 0.0
        %832 = vmatprep.subr.mxu0 0.0
        %833 = vmatpush1.msra.mxu0 0.0
        %834 = vmatprep.subr.mxu0 0.0
        %835 = vmatpush1.msra.mxu0 0.0
        %836 = vmatprep.subr.mxu0 0.0
        %837 = vmatpush1.msra.mxu0 0.0
        %838 = vmatprep.subr.mxu0 0.0
        %839 = vmatpush1.msra.mxu0 0.0
        %840 = vmatprep.subr.mxu0 0.0
        %841 = vmatpush1.msra.mxu0 0.0
        %842 = vmatprep.subr.mxu0 0.0
        %843 = vmatpush1.msra.mxu0 0.0
        %844 = vmatprep.subr.mxu0 0.0
        %845 = vmatpush1.msra.mxu0 0.0
        %846 = vmatprep.subr.mxu0 0.0
        %847 = vmatpush1.msra.mxu0 0.0
        %848 = vmatprep.subr.mxu0 0.0
        %849 = vmatpush1.msra.mxu0 0.0
        %850 = vmatprep.subr.mxu0 0.0
        %851 = vmatpush1.msra.mxu0 0.0
        %852 = vmatprep.subr.mxu0 0.0
        %853 = vmatpush1.msra.mxu0 0.0
        %854 = vmatprep.subr.mxu0 0.0
        %855 = vmatpush1.msra.mxu0 0.0
        %856 = vmatprep.subr.mxu0 0.0
        %857 = vmatpush1.msra.mxu0 0.0
        %858 = vmatprep.subr.mxu0 0.0
        %859 = vmatpush1.msra.mxu0 0.0
        %860 = vmatprep.subr.mxu0 0.0
        %861 = vmatpush1.msra.mxu0 %v735
        %862 = vmatprep.subr.mxu0 0.0
        %863 = vmatpush2.msra.mxu0 0.0
        %864 = vmatprep.subr.mxu0 0.0
        %865 = vmatpush2.msra.mxu0 0.0
        %866 = vmatprep.subr.mxu0 0.0
        %867 = vmatpush2.msra.mxu0 0.0
        %868 = vmatprep.subr.mxu0 0.0
        %869 = vmatpush2.msra.mxu0 0.0
        %870 = vmatprep.subr.mxu0 0.0
        %871 = vmatpush2.msra.mxu0 0.0
        %872 = vmatprep.subr.mxu0 0.0
        %873 = vmatpush2.msra.mxu0 0.0
        %874 = vmatprep.subr.mxu0 0.0
        %875 = vmatpush2.msra.mxu0 0.0
        %876 = vmatprep.subr.mxu0 0.0
        %877 = vmatpush2.msra.mxu0 0.0
        %878 = vmatprep.subr.mxu0 0.0
        %879 = vmatpush2.msra.mxu0 0.0
        %880 = vmatprep.subr.mxu0 0.0
        %881 = vmatpush2.msra.mxu0 0.0
        %882 = vmatprep.subr.mxu0 0.0
        %883 = vmatpush2.msra.mxu0 0.0
        %884 = vmatprep.subr.mxu0 0.0
        %885 = vmatpush2.msra.mxu0 0.0
        %886 = vmatprep.subr.mxu0 0.0
        %887 = vmatpush2.msra.mxu0 0.0
        %888 = vmatprep.subr.mxu0 0.0
        %889 = vmatpush2.msra.mxu0 0.0
        %890 = vmatprep.subr.mxu0 0.0
        %891 = vmatpush2.msra.mxu0 0.0
        %892 = vmatprep.subr.mxu0 0.0
        %893 = vmatpush2.msra.mxu0 0.0
        %894 = vmatprep.mubr.f32.mxu0 0.0
        %895 = vmatmul.mubr.f32.gmra.mxu0 %v828
        %v896 = vpop.f32.mrf.mxu0
        %v897 = vadd.f32 0.0, %v896
        %v898 = vpop.f32.mrf.mxu0
        %899 = vdwg.mxu0
        %900 = vrot.lane.b32.xlu0 %v573, 120
        %v901 = vpop.permute.xlu0 %900
        %902 = vrot.lane.b32.xlu0 %v654, 120
        %v903 = vpop.permute.xlu0 %902
        %v904 = vsel %vm738, %v901, 0
        %v906 = vsel %vm738, %v903, 0
        %908 = vmatprep.subr.mxu0 0.0
        %909 = vmatpush1.xpose.msra.mxu0 0.0
        %910 = vmatprep.subr.mxu0 0.0
        %911 = vmatpush1.xpose.msra.mxu0 0.0
        %912 = vmatprep.subr.mxu0 0.0
        %913 = vmatpush1.xpose.msra.mxu0 0.0
        %914 = vmatprep.subr.mxu0 0.0
        %915 = vmatpush1.xpose.msra.mxu0 0.0
        %916 = vmatprep.subr.mxu0 0.0
        %917 = vmatpush1.xpose.msra.mxu0 0.0
        %918 = vmatprep.subr.mxu0 0.0
        %919 = vmatpush1.xpose.msra.mxu0 0.0
        %920 = vmatprep.subr.mxu0 0.0
        %921 = vmatpush1.xpose.msra.mxu0 0.0
        %922 = vmatprep.subr.mxu0 0.0
        %923 = vmatpush1.xpose.msra.mxu0 0.0
        %924 = vmatprep.subr.mxu0 0.0
        %925 = vmatpush1.xpose.msra.mxu0 0.0
        %926 = vmatprep.subr.mxu0 0.0
        %927 = vmatpush1.xpose.msra.mxu0 0.0
        %928 = vmatprep.subr.mxu0 0.0
        %929 = vmatpush1.xpose.msra.mxu0 0.0
        %930 = vmatprep.subr.mxu0 0.0
        %931 = vmatpush1.xpose.msra.mxu0 0.0
        %932 = vmatprep.subr.mxu0 0.0
        %933 = vmatpush1.xpose.msra.mxu0 0.0
        %934 = vmatprep.subr.mxu0 0.0
        %935 = vmatpush1.xpose.msra.mxu0 0.0
        %936 = vmatprep.subr.mxu0 0.0
        %937 = vmatpush1.xpose.msra.mxu0 0.0
        %938 = vmatprep.subr.mxu0 0.0
        %939 = vmatpush1.xpose.msra.mxu0 %v906
        %940 = vmatprep.subr.mxu0 0.0
        %941 = vmatpush2.xpose.msra.mxu0 0.0
        %942 = vmatprep.subr.mxu0 0.0
        %943 = vmatpush2.xpose.msra.mxu0 0.0
        %944 = vmatprep.subr.mxu0 0.0
        %945 = vmatpush2.xpose.msra.mxu0 0.0
        %946 = vmatprep.subr.mxu0 0.0
        %947 = vmatpush2.xpose.msra.mxu0 0.0
        %948 = vmatprep.subr.mxu0 0.0
        %949 = vmatpush2.xpose.msra.mxu0 0.0
        %950 = vmatprep.subr.mxu0 0.0
        %951 = vmatpush2.xpose.msra.mxu0 0.0
        %952 = vmatprep.subr.mxu0 0.0
        %953 = vmatpush2.xpose.msra.mxu0 0.0
        %954 = vmatprep.subr.mxu0 0.0
        %955 = vmatpush2.xpose.msra.mxu0 0.0
        %956 = vmatprep.subr.mxu0 0.0
        %957 = vmatpush2.xpose.msra.mxu0 0.0
        %958 = vmatprep.subr.mxu0 0.0
        %959 = vmatpush2.xpose.msra.mxu0 0.0
        %960 = vmatprep.subr.mxu0 0.0
        %961 = vmatpush2.xpose.msra.mxu0 0.0
        %962 = vmatprep.subr.mxu0 0.0
        %963 = vmatpush2.xpose.msra.mxu0 0.0
        %964 = vmatprep.subr.mxu0 0.0
        %965 = vmatpush2.xpose.msra.mxu0 0.0
        %966 = vmatprep.subr.mxu0 0.0
        %967 = vmatpush2.xpose.msra.mxu0 0.0
        %968 = vmatprep.subr.mxu0 0.0
        %969 = vmatpush2.xpose.msra.mxu0 0.0
        %970 = vmatprep.subr.mxu0 0.0
        %971 = vmatpush2.xpose.msra.mxu0 0.0
        %972 = vmatprep.mubr.f32.mxu0 0.0
        %973 = vmatmul.mubr.f32.gmra.mxu0 %v904
        %v974 = vpop.f32.mrf.mxu0
        %v975 = vadd.f32 0.0, %v974
        %v976 = vpop.f32.mrf.mxu0
        %977 = vdwg.mxu0
        %v978 = vmul.f32 %v975, 0.35355338
        %v979 = vsel %vm738, %v978, -inf
        %980 = vmax.xlane.f32.xlu0 %v979
        %v981 = vpop.xlane.xlu0 %980
        %v982 = vsub.f32 %v978, %v981
        %v983 = vmul.f32 %v982, 1.442695
        %v984 = vpow.pop %v983
        %v985 = vsel %vm738, %v984, 0.0
        %986 = vadd.xlane.f32.xlu0 %v985
        %v987 = vpop.xlane.xlu0 %986
        %v988 = vrcp.pop %v987
        %v989 = vmul.f32 %v984, %v988
        %991 = vrot.lane.b32.xlu0 %v735, 120
        %v992 = vpop.permute.xlu0 %991
        %v995 = vsel %vm738, %v989, 0
        %997 = vmatprep.subr.mxu0 0.0
        %998 = vmatpush1.msra.mxu0 0.0
        %999 = vmatprep.subr.mxu0 0.0
        %1000 = vmatpush1.msra.mxu0 0.0
        %1001 = vmatprep.subr.mxu0 0.0
        %1002 = vmatpush1.msra.mxu0 0.0
        %1003 = vmatprep.subr.mxu0 0.0
        %1004 = vmatpush1.msra.mxu0 0.0
        %1005 = vmatprep.subr.mxu0 0.0
        %1006 = vmatpush1.msra.mxu0 0.0
        %1007 = vmatprep.subr.mxu0 0.0
        %1008 = vmatpush1.msra.mxu0 0.0
        %1009 = vmatprep.subr.mxu0 0.0
        %1010 = vmatpush1.msra.mxu0 0.0
        %1011 = vmatprep.subr.mxu0 0.0
        %1012 = vmatpush1.msra.mxu0 0.0
        %1013 = vmatprep.subr.mxu0 0.0
        %1014 = vmatpush1.msra.mxu0 0.0
        %1015 = vmatprep.subr.mxu0 0.0
        %1016 = vmatpush1.msra.mxu0 0.0
        %1017 = vmatprep.subr.mxu0 0.0
        %1018 = vmatpush1.msra.mxu0 0.0
        %1019 = vmatprep.subr.mxu0 0.0
        %1020 = vmatpush1.msra.mxu0 0.0
        %1021 = vmatprep.subr.mxu0 0.0
        %1022 = vmatpush1.msra.mxu0 0.0
        %1023 = vmatprep.subr.mxu0 0.0
        %1024 = vmatpush1.msra.mxu0 0.0
        %1025 = vmatprep.subr.mxu0 0.0
        %1026 = vmatpush1.msra.mxu0 0.0
        %1027 = vmatprep.subr.mxu0 0.0
        %1028 = vmatpush1.msra.mxu0 %v992
        %1029 = vmatprep.subr.mxu0 0.0
        %1030 = vmatpush2.msra.mxu0 0.0
        %1031 = vmatprep.subr.mxu0 0.0
        %1032 = vmatpush2.msra.mxu0 0.0
        %1033 = vmatprep.subr.mxu0 0.0
        %1034 = vmatpush2.msra.mxu0 0.0
        %1035 = vmatprep.subr.mxu0 0.0
        %1036 = vmatpush2.msra.mxu0 0.0
        %1037 = vmatprep.subr.mxu0 0.0
        %1038 = vmatpush2.msra.mxu0 0.0
        %1039 = vmatprep.subr.mxu0 0.0
        %1040 = vmatpush2.msra.mxu0 0.0
        %1041 = vmatprep.subr.mxu0 0.0
        %1042 = vmatpush2.msra.mxu0 0.0
        %1043 = vmatprep.subr.mxu0 0.0
        %1044 = vmatpush2.msra.mxu0 0.0
        %1045 = vmatprep.subr.mxu0 0.0
        %1046 = vmatpush2.msra.mxu0 0.0
        %1047 = vmatprep.subr.mxu0 0.0
        %1048 = vmatpush2.msra.mxu0 0.0
        %1049 = vmatprep.subr.mxu0 0.0
        %1050 = vmatpush2.msra.mxu0 0.0
        %1051 = vmatprep.subr.mxu0 0.0
        %1052 = vmatpush2.msra.mxu0 0.0
        %1053 = vmatprep.subr.mxu0 0.0
        %1054 = vmatpush2.msra.mxu0 0.0
        %1055 = vmatprep.subr.mxu0 0.0
        %1056 = vmatpush2.msra.mxu0 0.0
        %1057 = vmatprep.subr.mxu0 0.0
        %1058 = vmatpush2.msra.mxu0 0.0
        %1059 = vmatprep.subr.mxu0 0.0
        %1060 = vmatpush2.msra.mxu0 0.0
        %1061 = vmatprep.mubr.f32.mxu0 0.0
        %1062 = vmatmul.mubr.f32.gmra.mxu0 %v995
        %v1063 = vpop.f32.mrf.mxu0
        %v1064 = vadd.f32 0.0, %v1063
        %v1065 = vpop.f32.mrf.mxu0
        %1066 = vdwg.mxu0
        %1067 = vrot.lane.b32.xlu0 %v573, 112
        %v1068 = vpop.permute.xlu0 %1067
        %1069 = vrot.lane.b32.xlu0 %v654, 112
        %v1070 = vpop.permute.xlu0 %1069
        %v1071 = vsel %vm738, %v1068, 0
        %v1073 = vsel %vm738, %v1070, 0
        %1075 = vmatprep.subr.mxu0 0.0
        %1076 = vmatpush1.xpose.msra.mxu0 0.0
        %1077 = vmatprep.subr.mxu0 0.0
        %1078 = vmatpush1.xpose.msra.mxu0 0.0
        %1079 = vmatprep.subr.mxu0 0.0
        %1080 = vmatpush1.xpose.msra.mxu0 0.0
        %1081 = vmatprep.subr.mxu0 0.0
        %1082 = vmatpush1.xpose.msra.mxu0 0.0
        %1083 = vmatprep.subr.mxu0 0.0
        %1084 = vmatpush1.xpose.msra.mxu0 0.0
        %1085 = vmatprep.subr.mxu0 0.0
        %1086 = vmatpush1.xpose.msra.mxu0 0.0
        %1087 = vmatprep.subr.mxu0 0.0
        %1088 = vmatpush1.xpose.msra.mxu0 0.0
        %1089 = vmatprep.subr.mxu0 0.0
        %1090 = vmatpush1.xpose.msra.mxu0 0.0
        %1091 = vmatprep.subr.mxu0 0.0
        %1092 = vmatpush1.xpose.msra.mxu0 0.0
        %1093 = vmatprep.subr.mxu0 0.0
        %1094 = vmatpush1.xpose.msra.mxu0 0.0
        %1095 = vmatprep.subr.mxu0 0.0
        %1096 = vmatpush1.xpose.msra.mxu0 0.0
        %1097 = vmatprep.subr.mxu0 0.0
        %1098 = vmatpush1.xpose.msra.mxu0 0.0
        %1099 = vmatprep.subr.mxu0 0.0
        %1100 = vmatpush1.xpose.msra.mxu0 0.0
        %1101 = vmatprep.subr.mxu0 0.0
        %1102 = vmatpush1.xpose.msra.mxu0 0.0
        %1103 = vmatprep.subr.mxu0 0.0
        %1104 = vmatpush1.xpose.msra.mxu0 0.0
        %1105 = vmatprep.subr.mxu0 0.0
        %1106 = vmatpush1.xpose.msra.mxu0 %v1073
        %1107 = vmatprep.subr.mxu0 0.0
        %1108 = vmatpush2.xpose.msra.mxu0 0.0
        %1109 = vmatprep.subr.mxu0 0.0
        %1110 = vmatpush2.xpose.msra.mxu0 0.0
        %1111 = vmatprep.subr.mxu0 0.0
        %1112 = vmatpush2.xpose.msra.mxu0 0.0
        %1113 = vmatprep.subr.mxu0 0.0
        %1114 = vmatpush2.xpose.msra.mxu0 0.0
        %1115 = vmatprep.subr.mxu0 0.0
        %1116 = vmatpush2.xpose.msra.mxu0 0.0
        %1117 = vmatprep.subr.mxu0 0.0
        %1118 = vmatpush2.xpose.msra.mxu0 0.0
        %1119 = vmatprep.subr.mxu0 0.0
        %1120 = vmatpush2.xpose.msra.mxu0 0.0
        %1121 = vmatprep.subr.mxu0 0.0
        %1122 = vmatpush2.xpose.msra.mxu0 0.0
        %1123 = vmatprep.subr.mxu0 0.0
        %1124 = vmatpush2.xpose.msra.mxu0 0.0
        %1125 = vmatprep.subr.mxu0 0.0
        %1126 = vmatpush2.xpose.msra.mxu0 0.0
        %1127 = vmatprep.subr.mxu0 0.0
        %1128 = vmatpush2.xpose.msra.mxu0 0.0
        %1129 = vmatprep.subr.mxu0 0.0
        %1130 = vmatpush2.xpose.msra.mxu0 0.0
        %1131 = vmatprep.subr.mxu0 0.0
        %1132 = vmatpush2.xpose.msra.mxu0 0.0
        %1133 = vmatprep.subr.mxu0 0.0
        %1134 = vmatpush2.xpose.msra.mxu0 0.0
        %1135 = vmatprep.subr.mxu0 0.0
        %1136 = vmatpush2.xpose.msra.mxu0 0.0
        %1137 = vmatprep.subr.mxu0 0.0
        %1138 = vmatpush2.xpose.msra.mxu0 0.0
        %1139 = vmatprep.mubr.f32.mxu0 0.0
        %1140 = vmatmul.mubr.f32.gmra.mxu0 %v1071
        %v1141 = vpop.f32.mrf.mxu0
        %v1142 = vadd.f32 0.0, %v1141
        %v1143 = vpop.f32.mrf.mxu0
        %1144 = vdwg.mxu0
        %v1145 = vmul.f32 %v1142, 0.35355338
        %v1146 = vsel %vm738, %v1145, -inf
        %1147 = vmax.xlane.f32.xlu0 %v1146
        %v1148 = vpop.xlane.xlu0 %1147
        %v1149 = vsub.f32 %v1145, %v1148
        %v1150 = vmul.f32 %v1149, 1.442695
        %v1151 = vpow.pop %v1150
        %v1152 = vsel %vm738, %v1151, 0.0
        %1153 = vadd.xlane.f32.xlu0 %v1152
        %v1154 = vpop.xlane.xlu0 %1153
        %v1155 = vrcp.pop %v1154
        %v1156 = vmul.f32 %v1151, %v1155
        %1157 = vrot.lane.b32.xlu0 %v735, 112
        %v1158 = vpop.permute.xlu0 %1157
        %v1161 = vsel %vm738, %v1156, 0
        %1163 = vmatprep.subr.mxu0 0.0
        %1164 = vmatpush1.msra.mxu0 0.0
        %1165 = vmatprep.subr.mxu0 0.0
        %1166 = vmatpush1.msra.mxu0 0.0
        %1167 = vmatprep.subr.mxu0 0.0
        %1168 = vmatpush1.msra.mxu0 0.0
        %1169 = vmatprep.subr.mxu0 0.0
        %1170 = vmatpush1.msra.mxu0 0.0
        %1171 = vmatprep.subr.mxu0 0.0
        %1172 = vmatpush1.msra.mxu0 0.0
        %1173 = vmatprep.subr.mxu0 0.0
        %1174 = vmatpush1.msra.mxu0 0.0
        %1175 = vmatprep.subr.mxu0 0.0
        %1176 = vmatpush1.msra.mxu0 0.0
        %1177 = vmatprep.subr.mxu0 0.0
        %1178 = vmatpush1.msra.mxu0 0.0
        %1179 = vmatprep.subr.mxu0 0.0
        %1180 = vmatpush1.msra.mxu0 0.0
        %1181 = vmatprep.subr.mxu0 0.0
        %1182 = vmatpush1.msra.mxu0 0.0
        %1183 = vmatprep.subr.mxu0 0.0
        %1184 = vmatpush1.msra.mxu0 0.0
        %1185 = vmatprep.subr.mxu0 0.0
        %1186 = vmatpush1.msra.mxu0 0.0
        %1187 = vmatprep.subr.mxu0 0.0
        %1188 = vmatpush1.msra.mxu0 0.0
        %1189 = vmatprep.subr.mxu0 0.0
        %1190 = vmatpush1.msra.mxu0 0.0
        %1191 = vmatprep.subr.mxu0 0.0
        %1192 = vmatpush1.msra.mxu0 0.0
        %1193 = vmatprep.subr.mxu0 0.0
        %1194 = vmatpush1.msra.mxu0 %v1158
        %1195 = vmatprep.subr.mxu0 0.0
        %1196 = vmatpush2.msra.mxu0 0.0
        %1197 = vmatprep.subr.mxu0 0.0
        %1198 = vmatpush2.msra.mxu0 0.0
        %1199 = vmatprep.subr.mxu0 0.0
        %1200 = vmatpush2.msra.mxu0 0.0
        %1201 = vmatprep.subr.mxu0 0.0
        %1202 = vmatpush2.msra.mxu0 0.0
        %1203 = vmatprep.subr.mxu0 0.0
        %1204 = vmatpush2.msra.mxu0 0.0
        %1205 = vmatprep.subr.mxu0 0.0
        %1206 = vmatpush2.msra.mxu0 0.0
        %1207 = vmatprep.subr.mxu0 0.0
        %1208 = vmatpush2.msra.mxu0 0.0
        %1209 = vmatprep.subr.mxu0 0.0
        %1210 = vmatpush2.msra.mxu0 0.0
        %1211 = vmatprep.subr.mxu0 0.0
        %1212 = vmatpush2.msra.mxu0 0.0
        %1213 = vmatprep.subr.mxu0 0.0
        %1214 = vmatpush2.msra.mxu0 0.0
        %1215 = vmatprep.subr.mxu0 0.0
        %1216 = vmatpush2.msra.mxu0 0.0
        %1217 = vmatprep.subr.mxu0 0.0
        %1218 = vmatpush2.msra.mxu0 0.0
        %1219 = vmatprep.subr.mxu0 0.0
        %1220 = vmatpush2.msra.mxu0 0.0
        %1221 = vmatprep.subr.mxu0 0.0
        %1222 = vmatpush2.msra.mxu0 0.0
        %1223 = vmatprep.subr.mxu0 0.0
        %1224 = vmatpush2.msra.mxu0 0.0
        %1225 = vmatprep.subr.mxu0 0.0
        %1226 = vmatpush2.msra.mxu0 0.0
        %1227 = vmatprep.mubr.f32.mxu0 0.0
        %1228 = vmatmul.mubr.f32.gmra.mxu0 %v1161
        %v1229 = vpop.f32.mrf.mxu0
        %v1230 = vadd.f32 0.0, %v1229
        %v1231 = vpop.f32.mrf.mxu0
        %1232 = vdwg.mxu0
        %1233 = vrot.lane.b32.xlu0 %v573, 104
        %v1234 = vpop.permute.xlu0 %1233
        %1235 = vrot.lane.b32.xlu0 %v654, 104
        %v1236 = vpop.permute.xlu0 %1235
        %v1237 = vsel %vm738, %v1234, 0
        %v1239 = vsel %vm738, %v1236, 0
        %1241 = vmatprep.subr.mxu0 0.0
        %1242 = vmatpush1.xpose.msra.mxu0 0.0
        %1243 = vmatprep.subr.mxu0 0.0
        %1244 = vmatpush1.xpose.msra.mxu0 0.0
        %1245 = vmatprep.subr.mxu0 0.0
        %1246 = vmatpush1.xpose.msra.mxu0 0.0
        %1247 = vmatprep.subr.mxu0 0.0
        %1248 = vmatpush1.xpose.msra.mxu0 0.0
        %1249 = vmatprep.subr.mxu0 0.0
        %1250 = vmatpush1.xpose.msra.mxu0 0.0
        %1251 = vmatprep.subr.mxu0 0.0
        %1252 = vmatpush1.xpose.msra.mxu0 0.0
        %1253 = vmatprep.subr.mxu0 0.0
        %1254 = vmatpush1.xpose.msra.mxu0 0.0
        %1255 = vmatprep.subr.mxu0 0.0
        %1256 = vmatpush1.xpose.msra.mxu0 0.0
        %1257 = vmatprep.subr.mxu0 0.0
        %1258 = vmatpush1.xpose.msra.mxu0 0.0
        %1259 = vmatprep.subr.mxu0 0.0
        %1260 = vmatpush1.xpose.msra.mxu0 0.0
        %1261 = vmatprep.subr.mxu0 0.0
        %1262 = vmatpush1.xpose.msra.mxu0 0.0
        %1263 = vmatprep.subr.mxu0 0.0
        %1264 = vmatpush1.xpose.msra.mxu0 0.0
        %1265 = vmatprep.subr.mxu0 0.0
        %1266 = vmatpush1.xpose.msra.mxu0 0.0
        %1267 = vmatprep.subr.mxu0 0.0
        %1268 = vmatpush1.xpose.msra.mxu0 0.0
        %1269 = vmatprep.subr.mxu0 0.0
        %1270 = vmatpush1.xpose.msra.mxu0 0.0
        %1271 = vmatprep.subr.mxu0 0.0
        %1272 = vmatpush1.xpose.msra.mxu0 %v1239
        %1273 = vmatprep.subr.mxu0 0.0
        %1274 = vmatpush2.xpose.msra.mxu0 0.0
        %1275 = vmatprep.subr.mxu0 0.0
        %1276 = vmatpush2.xpose.msra.mxu0 0.0
        %1277 = vmatprep.subr.mxu0 0.0
        %1278 = vmatpush2.xpose.msra.mxu0 0.0
        %1279 = vmatprep.subr.mxu0 0.0
        %1280 = vmatpush2.xpose.msra.mxu0 0.0
        %1281 = vmatprep.subr.mxu0 0.0
        %1282 = vmatpush2.xpose.msra.mxu0 0.0
        %1283 = vmatprep.subr.mxu0 0.0
        %1284 = vmatpush2.xpose.msra.mxu0 0.0
        %1285 = vmatprep.subr.mxu0 0.0
        %1286 = vmatpush2.xpose.msra.mxu0 0.0
        %1287 = vmatprep.subr.mxu0 0.0
        %1288 = vmatpush2.xpose.msra.mxu0 0.0
        %1289 = vmatprep.subr.mxu0 0.0
        %1290 = vmatpush2.xpose.msra.mxu0 0.0
        %1291 = vmatprep.subr.mxu0 0.0
        %1292 = vmatpush2.xpose.msra.mxu0 0.0
        %1293 = vmatprep.subr.mxu0 0.0
        %1294 = vmatpush2.xpose.msra.mxu0 0.0
        %1295 = vmatprep.subr.mxu0 0.0
        %1296 = vmatpush2.xpose.msra.mxu0 0.0
        %1297 = vmatprep.subr.mxu0 0.0
        %1298 = vmatpush2.xpose.msra.mxu0 0.0
        %1299 = vmatprep.subr.mxu0 0.0
        %1300 = vmatpush2.xpose.msra.mxu0 0.0
        %1301 = vmatprep.subr.mxu0 0.0
        %1302 = vmatpush2.xpose.msra.mxu0 0.0
        %1303 = vmatprep.subr.mxu0 0.0
        %1304 = vmatpush2.xpose.msra.mxu0 0.0
        %1305 = vmatprep.mubr.f32.mxu0 0.0
        %1306 = vmatmul.mubr.f32.gmra.mxu0 %v1237
        %v1307 = vpop.f32.mrf.mxu0
        %v1308 = vadd.f32 0.0, %v1307
        %v1309 = vpop.f32.mrf.mxu0
        %1310 = vdwg.mxu0
        %v1311 = vmul.f32 %v1308, 0.35355338
        %v1312 = vsel %vm738, %v1311, -inf
        %1313 = vmax.xlane.f32.xlu0 %v1312
        %v1314 = vpop.xlane.xlu0 %1313
        %v1315 = vsub.f32 %v1311, %v1314
        %v1316 = vmul.f32 %v1315, 1.442695
        %v1317 = vpow.pop %v1316
        %v1318 = vsel %vm738, %v1317, 0.0
        %1319 = vadd.xlane.f32.xlu0 %v1318
        %v1320 = vpop.xlane.xlu0 %1319
        %v1321 = vrcp.pop %v1320
        %v1322 = vmul.f32 %v1317, %v1321
        %1323 = vrot.lane.b32.xlu0 %v735, 104
        %v1324 = vpop.permute.xlu0 %1323
        %v1327 = vsel %vm738, %v1322, 0
        %1329 = vmatprep.subr.mxu0 0.0
        %1330 = vmatpush1.msra.mxu0 0.0
        %1331 = vmatprep.subr.mxu0 0.0
        %1332 = vmatpush1.msra.mxu0 0.0
        %1333 = vmatprep.subr.mxu0 0.0
        %1334 = vmatpush1.msra.mxu0 0.0
        %1335 = vmatprep.subr.mxu0 0.0
        %1336 = vmatpush1.msra.mxu0 0.0
        %1337 = vmatprep.subr.mxu0 0.0
        %1338 = vmatpush1.msra.mxu0 0.0
        %1339 = vmatprep.subr.mxu0 0.0
        %1340 = vmatpush1.msra.mxu0 0.0
        %1341 = vmatprep.subr.mxu0 0.0
        %1342 = vmatpush1.msra.mxu0 0.0
        %1343 = vmatprep.subr.mxu0 0.0
        %1344 = vmatpush1.msra.mxu0 0.0
        %1345 = vmatprep.subr.mxu0 0.0
        %1346 = vmatpush1.msra.mxu0 0.0
        %1347 = vmatprep.subr.mxu0 0.0
        %1348 = vmatpush1.msra.mxu0 0.0
        %1349 = vmatprep.subr.mxu0 0.0
        %1350 = vmatpush1.msra.mxu0 0.0
        %1351 = vmatprep.subr.mxu0 0.0
        %1352 = vmatpush1.msra.mxu0 0.0
        %1353 = vmatprep.subr.mxu0 0.0
        %1354 = vmatpush1.msra.mxu0 0.0
        %1355 = vmatprep.subr.mxu0 0.0
        %1356 = vmatpush1.msra.mxu0 0.0
        %1357 = vmatprep.subr.mxu0 0.0
        %1358 = vmatpush1.msra.mxu0 0.0
        %1359 = vmatprep.subr.mxu0 0.0
        %1360 = vmatpush1.msra.mxu0 %v1324
        %1361 = vmatprep.subr.mxu0 0.0
        %1362 = vmatpush2.msra.mxu0 0.0
        %1363 = vmatprep.subr.mxu0 0.0
        %1364 = vmatpush2.msra.mxu0 0.0
        %1365 = vmatprep.subr.mxu0 0.0
        %1366 = vmatpush2.msra.mxu0 0.0
        %1367 = vmatprep.subr.mxu0 0.0
        %1368 = vmatpush2.msra.mxu0 0.0
        %1369 = vmatprep.subr.mxu0 0.0
        %1370 = vmatpush2.msra.mxu0 0.0
        %1371 = vmatprep.subr.mxu0 0.0
        %1372 = vmatpush2.msra.mxu0 0.0
        %1373 = vmatprep.subr.mxu0 0.0
        %1374 = vmatpush2.msra.mxu0 0.0
        %1375 = vmatprep.subr.mxu0 0.0
        %1376 = vmatpush2.msra.mxu0 0.0
        %1377 = vmatprep.subr.mxu0 0.0
        %1378 = vmatpush2.msra.mxu0 0.0
        %1379 = vmatprep.subr.mxu0 0.0
        %1380 = vmatpush2.msra.mxu0 0.0
        %1381 = vmatprep.subr.mxu0 0.0
        %1382 = vmatpush2.msra.mxu0 0.0
        %1383 = vmatprep.subr.mxu0 0.0
        %1384 = vmatpush2.msra.mxu0 0.0
        %1385 = vmatprep.subr.mxu0 0.0
        %1386 = vmatpush2.msra.mxu0 0.0
        %1387 = vmatprep.subr.mxu0 0.0
        %1388 = vmatpush2.msra.mxu0 0.0
        %1389 = vmatprep.subr.mxu0 0.0
        %1390 = vmatpush2.msra.mxu0 0.0
        %1391 = vmatprep.subr.mxu0 0.0
        %1392 = vmatpush2.msra.mxu0 0.0
        %1393 = vmatprep.mubr.f32.mxu0 0.0
        %1394 = vmatmul.mubr.f32.gmra.mxu0 %v1327
        %v1395 = vpop.f32.mrf.mxu0
        %v1396 = vadd.f32 0.0, %v1395
        %v1397 = vpop.f32.mrf.mxu0
        %1398 = vdwg.mxu0
        %1400 = vrot.lane.b32.xlu0 %v1064, 8
        %v1401 = vpop.permute.xlu0 %1400
        %1404 = vrot.lane.b32.xlu0 %v1230, 16
        %v1405 = vpop.permute.xlu0 %1404
        %1408 = vrot.lane.b32.xlu0 %v1396, 24
        %v1409 = vpop.permute.xlu0 %1408
        %v1411 = vsel %vm738, %v897, %v1401
        %vm1412 = vcmask 130048
        %v1413 = vsel %vm1412, %v1411, %v1405
        %vm1414 = vcmask 195584
        %v1415 = vsel %vm1414, %v1413, %v1409
        %v1416 = vld [vmem:[#allocation10] sm:$0xff]
        %v1417 = vld [vmem:[#allocation10 + $0x8] sm:$0xff]
        %v1418 = vld [vmem:[#allocation10 + $0x10] sm:$0xff]
        %v1419 = vld [vmem:[#allocation10 + $0x18] sm:$0xff]
        %v1420 = vld [vmem:[%s10] sm:$0x1]
        %v1422 = vlaneseq
        %v1423 = vshrl.u32 %v1422, 7
        %v1424 = vsub.s32 0, %v1423
        %v1425 = vrot.slane %v1420, %v1424
        %v1428 = vsel %vm463, %v1415, 0
        %1430 = vmatprep.subr.mxu0 0.0
        %1431 = vmatpush1.msra.mxu0 0.0
        %1432 = vmatprep.subr.mxu0 0.0
        %1433 = vmatpush1.msra.mxu0 0.0
        %1434 = vmatprep.subr.mxu0 0.0
        %1435 = vmatpush1.msra.mxu0 0.0
        %1436 = vmatprep.subr.mxu0 0.0
        %1437 = vmatpush1.msra.mxu0 0.0
        %1438 = vmatprep.subr.mxu0 0.0
        %1439 = vmatpush1.msra.mxu0 0.0
        %1440 = vmatprep.subr.mxu0 0.0
        %1441 = vmatpush1.msra.mxu0 0.0
        %1442 = vmatprep.subr.mxu0 0.0
        %1443 = vmatpush1.msra.mxu0 0.0
        %1444 = vmatprep.subr.mxu0 0.0
        %1445 = vmatpush1.msra.mxu0 0.0
        %1446 = vmatprep.subr.mxu0 0.0
        %1447 = vmatpush1.msra.mxu0 0.0
        %1448 = vmatprep.subr.mxu0 0.0
        %1449 = vmatpush1.msra.mxu0 0.0
        %1450 = vmatprep.subr.mxu0 0.0
        %1451 = vmatpush1.msra.mxu0 0.0
        %1452 = vmatprep.subr.mxu0 0.0
        %1453 = vmatpush1.msra.mxu0 0.0
        %1454 = vmatprep.subr.mxu0 0.0
        %1455 = vmatpush1.msra.mxu0 %v1419
        %1456 = vmatprep.subr.mxu0 0.0
        %1457 = vmatpush1.msra.mxu0 %v1418
        %1458 = vmatprep.subr.mxu0 0.0
        %1459 = vmatpush1.msra.mxu0 %v1417
        %1460 = vmatprep.subr.mxu0 0.0
        %1461 = vmatpush1.msra.mxu0 %v1416
        %1462 = vmatprep.subr.mxu0 0.0
        %1463 = vmatpush2.msra.mxu0 0.0
        %1464 = vmatprep.subr.mxu0 0.0
        %1465 = vmatpush2.msra.mxu0 0.0
        %1466 = vmatprep.subr.mxu0 0.0
        %1467 = vmatpush2.msra.mxu0 0.0
        %1468 = vmatprep.subr.mxu0 0.0
        %1469 = vmatpush2.msra.mxu0 0.0
        %1470 = vmatprep.subr.mxu0 0.0
        %1471 = vmatpush2.msra.mxu0 0.0
        %1472 = vmatprep.subr.mxu0 0.0
        %1473 = vmatpush2.msra.mxu0 0.0
        %1474 = vmatprep.subr.mxu0 0.0
        %1475 = vmatpush2.msra.mxu0 0.0
        %1476 = vmatprep.subr.mxu0 0.0
        %1477 = vmatpush2.msra.mxu0 0.0
        %1478 = vmatprep.subr.mxu0 0.0
        %1479 = vmatpush2.msra.mxu0 0.0
        %1480 = vmatprep.subr.mxu0 0.0
        %1481 = vmatpush2.msra.mxu0 0.0
        %1482 = vmatprep.subr.mxu0 0.0
        %1483 = vmatpush2.msra.mxu0 0.0
        %1484 = vmatprep.subr.mxu0 0.0
        %1485 = vmatpush2.msra.mxu0 0.0
        %1486 = vmatprep.subr.mxu0 0.0
        %1487 = vmatpush2.msra.mxu0 0.0
        %1488 = vmatprep.subr.mxu0 0.0
        %1489 = vmatpush2.msra.mxu0 0.0
        %1490 = vmatprep.subr.mxu0 0.0
        %1491 = vmatpush2.msra.mxu0 0.0
        %1492 = vmatprep.subr.mxu0 0.0
        %1493 = vmatpush2.msra.mxu0 0.0
        %1494 = vmatprep.mubr.f32.mxu0 0.0
        %1495 = vmatmul.mubr.f32.gmra.mxu0 %v1428
        %v1496 = vpop.f32.mrf.mxu0
        %v1497 = vadd.f32 %v1425, %v1496
        %v1498 = vpop.f32.mrf.mxu0
        %1499 = vdwg.mxu0
        %v1500 = vadd.f32 %v460, %v1497
        %1501 = vst.msk [vmem:[%s459] sm:$0xff] %vm463, %v1500
        %s1502 = sand.u32 %s274, 1
        %s1503 = scalar_lea.sflag [#allocation4], %s1502
        %s1504 = sand.u32 %s274, 1
        %s1505 = smul.addr %s1504, 8
        %s1506 = scalar_lea.vmem [#allocation11], %s1505
        // Predicated region
        $region85: #{tpu_custom_call.1} parent=63 // pred_check
          %p1507 = pneg %p284
        $region86: #{tpu_custom_call.1} parent=63 // pred_check_branch
          %1509 = sbr.rel (%p1507) target = $region88
        $region87: #{tpu_custom_call.1} parent=63 // pred_region
          %s1511 = ssub.s32 128, 128
          %1512 = vsyncadd %s1503, %s1511
          %s1513 = smul.addr %s30, 128
          %s1514 = scalar_lea.hbm %s11, %s1513
          %s1516 = sshll.u32 %s1506, 4
          %s1517 = int_to_ptr.vmem [resolvable:$true] %s1516
          %1519 = dma.vmem_to_hbm [thread:$0]  %s1517, 128, %s1514, %s1503
        $region88: #{tpu_custom_call.1} parent=63 // pred_fallthru
          _
      $region64: #{tpu_custom_call.1} parent=5 // pred_fallthru
        _
      %p1520 = scmp.le.s32.totalorder 2, %s25
      // Predicated region
      $region89: #{tpu_custom_call.1} parent=5 // pred_check
        %p1521 = pneg %p1520
      $region90: #{tpu_custom_call.1} parent=5 // pred_check_branch
        %1523 = sbr.rel (%p1521) target = $region92
      $region91: #{tpu_custom_call.1} parent=5 // pred_region
        %s1524 = ssub.s32 %s25, 2
        // Predicated region
        $region93: #{tpu_custom_call.1} parent=91 // pred_check
          %p1525 = pneg %p290
        $region94: #{tpu_custom_call.1} parent=91 // pred_check_branch
          %1527 = sbr.rel (%p1525) target = $region96
        $region95: #{tpu_custom_call.1} parent=91 // pred_region
          %s1528 = sand.u32 %s275, 1
          %s1529 = scalar_lea.sflag [#allocation4], %s1528
          %s1530 = sand.u32 %s275, 1
          %s1531 = smul.addr %s1530, 8
          %s1532 = scalar_lea.vmem [#allocation11], %s1531
          %1533 = dma.done %s1529, 128
        $region96: #{tpu_custom_call.1} parent=91 // pred_fallthru
          _
      $region92: #{tpu_custom_call.1} parent=5 // pred_fallthru
        _
    $region6: #{tpu_custom_call.1} parent=1 // loop_footer
      %s29 = sadd.s32 1, %s25
    $region7: #{tpu_custom_call.1} parent=1 // loop_footer_branch
      %24 = sbr.rel target = $region3
    $region8: #{tpu_custom_call.1} parent=1 // loop_exit
      _
    %1534 = vsyncpa [#allocation3], 1
    %s1535 = scalar_lea.sflag [#allocation3], 1
    %1536 = vsyncpa %s1535, 1
    %1537 = vsyncpa [#allocation6], 1
    %1538 = vsyncpa [#allocation9], 1
    %1539 = vsyncpa [#allocation4], 1
    %s1540 = scalar_lea.sflag [#allocation4], 1
    %1541 = vsyncpa %s1540, 1

</llo_original>
